<compile_context>
chip_gen: v7x
topology: tpu7x:2x2x1
jax: 0.10.0
libtpu: 0.0.40
codegen_flags: <defaults>
</compile_context>

<pallas_src>
import numpy as np

import jax
import jax.numpy as jnp
from jax import lax
from jax.experimental import pallas as pl
from jax.experimental.pallas import tpu as pltpu


# ------------------------------ Pallas kernel ------------------------------ #

def _cnn_ae_kernel(x_ref, k0_ref, b0_ref, k1_ref, b1_ref, k2_ref, b2_ref,
                   k3_ref, b3_ref, o_ref):
    f32 = jnp.float32

    def conv3x3(xp, k_ref, b_ref, h):
        # xp: (h+2, Lin) height-zero-padded rows, lanes packed as (w, cin).
        # k_ref: (3, Lin, Lout) banded per-row-tap weights (width conv, width
        # zero-padding and channel packing folded into the contraction dim).
        acc = jnp.dot(xp[0:h, :].astype(jnp.bfloat16), k_ref[0],
                      preferred_element_type=f32)
        acc = acc + jnp.dot(xp[1:h + 1, :].astype(jnp.bfloat16), k_ref[1],
                            preferred_element_type=f32)
        acc = acc + jnp.dot(xp[2:h + 2, :].astype(jnp.bfloat16), k_ref[2],
                            preferred_element_type=f32)
        return acc + b_ref[...]

    def pad_rows(y):
        z = jnp.zeros((1, y.shape[1]), f32)
        return jnp.concatenate([z, y, z], axis=0)

    def pool2x2_relu(y, w_out, c):
        # y: (2*h_out, 2*w_out*c), lanes packed as (w, c).
        h_out = y.shape[0] // 2
        rows = [jnp.maximum(y[2 * i:2 * i + 1, :], y[2 * i + 1:2 * i + 2, :])
                for i in range(h_out)]
        rp = jnp.concatenate(rows, axis=0) if h_out > 1 else rows[0]
        cols = [jnp.maximum(rp[:, (2 * j) * c:(2 * j + 1) * c],
                            rp[:, (2 * j + 1) * c:(2 * j + 2) * c])
                for j in range(w_out)]
        cp = jnp.concatenate(cols, axis=1) if w_out > 1 else cols[0]
        return jnp.maximum(cp, 0.0)

    x = x_ref[0]                                     # (18, 16) H-padded input
    y0 = conv3x3(x, k0_ref, b0_ref, 16)              # (16, 128) = 16 x (16w, 8c)
    a1 = pool2x2_relu(y0, 8, 8)                      # (8, 64)
    y1 = conv3x3(pad_rows(a1), k1_ref, b1_ref, 8)    # (8, 128)  = 8 x (8w, 16c)
    a2 = pool2x2_relu(y1, 4, 16)                     # (4, 64)
    y2 = conv3x3(pad_rows(a2), k2_ref, b2_ref, 4)    # (4, 128)  = 4 x (4w, 2x2 phases x 8c)
    a3 = jnp.maximum(y2, 0.0)                        # relu(convDec0)
    y3 = conv3x3(pad_rows(a3), k3_ref, b3_ref, 4)    # (4, 64)   = 4 x (4w, 4x4 phases)
    o_ref[0] = jax.nn.sigmoid(y3)


# ------------------- weight pre-transforms (host, one-off) ------------------ #

def _banded(w_taps, w_in, w_out):
    # w_taps: (3, 3, Ci, Co) effective 3x3 / stride-1 / pad-1 conv taps
    # (kh, kw, ci, co).  Returns (3, w_in*Ci, w_out*Co): per kernel-row tap, a
    # banded matrix implementing the width convolution (with implicit zero
    # padding) on lane-packed (w, c) rows.
    kh, kw, ci, co = w_taps.shape
    K = np.zeros((kh, w_in, ci, w_out, co), np.float32)
    for t in range(kh):
        for s in range(kw):
            for w in range(w_out):
                wi = w + s - 1
                if 0 <= wi < w_in:
                    K[t, wi, :, w, :] = w_taps[t, s]
    return K.reshape(kh, w_in * ci, w_out * co)


def _conv_taps(w_oihw):
    # Conv2d weight (Co, Ci, 3, 3) -> taps (kh, kw, Ci, Co).
    return np.transpose(np.asarray(w_oihw, np.float32), (2, 3, 1, 0))


def _convT_x2_taps(w_iohw):
    # ConvTranspose2d(k=4, s=2, p=1), weight (Ci, Co, 4, 4), as a 3x3/pad=1
    # conv on the coarse grid whose output channels are the 2x2 sub-pixel
    # phases: out_ch = r*2*Co + c*Co + co, with out[2m+r, 2n+c] = conv result.
    wt = np.asarray(w_iohw, np.float32)
    ci, co = wt.shape[0], wt.shape[1]
    t = np.zeros((3, 3, ci, 2, 2, co), np.float32)
    for kh in range(3):
        for kw in range(3):
            for r in range(2):
                for c in range(2):
                    a, b = r + 3 - 2 * kh, c + 3 - 2 * kw
                    if 0 <= a < 4 and 0 <= b < 4:
                        t[kh, kw, :, r, c, :] = wt[:, :, a, b]
    return t.reshape(3, 3, ci, 4 * co)


def _convT_x4_taps(w_iohw):
    # Second ConvTranspose2d(k=4, s=2, p=1) composed on top of the first one's
    # phase-packed output: a 3x3/pad=1 conv on the SAME coarse grid with input
    # channels (r1, c1, ci) (the previous layer's phases) and output channels
    # the 4x4 sub-pixel phases (u, v):  out[4s+u, 4n+v] = conv result.
    wt = np.asarray(w_iohw, np.float32)
    ci, co = wt.shape[0], wt.shape[1]
    t = np.zeros((3, 3, 2, 2, ci, 4, 4, co), np.float32)
    for kh in range(3):
        for kw in range(3):
            for r1 in range(2):
                for c1 in range(2):
                    for u in range(4):
                        for v in range(4):
                            a = u + 5 - 4 * kh - 2 * r1
                            b = v + 5 - 4 * kw - 2 * c1
                            if 0 <= a < 4 and 0 <= b < 4:
                                t[kh, kw, r1, c1, :, u, v, :] = wt[:, :, a, b]
    return t.reshape(3, 3, 4 * ci, 16 * co)


def prepare_kernel_params(params):
    (w0, b0), (w1, b1) = params["conv0"], params["conv1"]
    (wd, bd), (wo, bo) = params["convDec0"], params["output"]
    mk = lambda a: jnp.asarray(a, jnp.bfloat16)
    row = lambda b, reps: jnp.asarray(np.tile(np.asarray(b, np.float32), reps))[None, :]
    return dict(
        k0=mk(_banded(_conv_taps(w0), 16, 16)),     # (3, 16, 128)
        b0=row(b0, 16),                             # (1, 128)
        k1=mk(_banded(_conv_taps(w1), 8, 8)),       # (3, 64, 128)
        b1=row(b1, 8),                              # (1, 128)
        k2=mk(_banded(_convT_x2_taps(wd), 4, 4)),   # (3, 64, 128)
        b2=row(bd, 16),                             # (1, 128)
        k3=mk(_banded(_convT_x4_taps(wo), 4, 4)),   # (3, 128, 64)
        b3=row(np.full(16, float(np.asarray(bo)[0]), np.float32), 4),  # (1, 64)
    )


# --------------------------------- forward ---------------------------------- #

@jax.jit
def cnn_class_forward(x_nchw, kp):
    B = x_nchw.shape[0]
    x = jnp.asarray(x_nchw, jnp.float32)[:, 0, :, :]     # (B, 16, 16)
    x = jnp.pad(x, ((0, 0), (1, 1), (0, 0)))             # (B, 18, 16) height pad

    out = pl.pallas_call(
        _cnn_ae_kernel,
        out_shape=jax.ShapeDtypeStruct((B, 4, 64), jnp.float32),
        grid=(B,),
        in_specs=[
            pl.BlockSpec((1, 18, 16), lambda b: (b, 0, 0)),
            pl.BlockSpec((3, 16, 128), lambda b: (0, 0, 0)),
            pl.BlockSpec((1, 128), lambda b: (0, 0)),
            pl.BlockSpec((3, 64, 128), lambda b: (0, 0, 0)),
            pl.BlockSpec((1, 128), lambda b: (0, 0)),
            pl.BlockSpec((3, 64, 128), lambda b: (0, 0, 0)),
            pl.BlockSpec((1, 128), lambda b: (0, 0)),
            pl.BlockSpec((3, 128, 64), lambda b: (0, 0, 0)),
            pl.BlockSpec((1, 64), lambda b: (0, 0)),
        ],
        out_specs=pl.BlockSpec((1, 4, 64), lambda b: (b, 0, 0)),
        compiler_params=pltpu.CompilerParams(dimension_semantics=("parallel",)),
    )(x, kp["k0"], kp["b0"], kp["k1"], kp["b1"],
      kp["k2"], kp["b2"], kp["k3"], kp["b3"])

    # Final sub-pixel un-shuffle (tiny, XLA side): lanes are (n, u, v) with
    # output pixel (4s+u, 4n+v).
    o = out.reshape(B, 4, 4, 4, 4)            # (b, s, n, u, v)
    o = jnp.transpose(o, (0, 1, 3, 2, 4))     # (b, s, u, n, v)
    return o.reshape(B, 1, 16, 16)


# --------------------------- pure-JAX reference ----------------------------- #

def reference_forward(x_nchw, params):
    x = jnp.asarray(x_nchw, jnp.float32)

    def conv(x, w, b):
        y = lax.conv_general_dilated(x, jnp.asarray(w), (1, 1), [(1, 1), (1, 1)],
                                     dimension_numbers=("NCHW", "OIHW", "NCHW"))
        return y + jnp.asarray(b).reshape(1, -1, 1, 1)

    def convT(x, w, b):
        w = jnp.asarray(w)
        wt = jnp.transpose(w, (1, 0, 2, 3))[:, :, ::-1, ::-1]
        y = lax.conv_general_dilated(x, wt, (1, 1), [(2, 2), (2, 2)],
                                     lhs_dilation=(2, 2),
                                     dimension_numbers=("NCHW", "OIHW", "NCHW"))
        return y + jnp.asarray(b).reshape(1, -1, 1, 1)

    def pool(x):
        return lax.reduce_window(x, -jnp.inf, lax.max,
                                 (1, 1, 2, 2), (1, 1, 2, 2), "VALID")

    x = jax.nn.relu(pool(conv(x, *params["conv0"])))
    x = jax.nn.relu(pool(conv(x, *params["conv1"])))
    x = jax.nn.relu(convT(x, *params["convDec0"]))
    return jax.nn.sigmoid(convT(x, *params["output"]))


# -------------------------- deterministic params ---------------------------- #

def init_params(key):
    def uinit(k, shape, fan_in):
        bound = 1.0 / float(fan_in) ** 0.5
        return jax.random.uniform(k, shape, jnp.float32, -bound, bound)

    ks = jax.random.split(key, 8)
    params = {}
    # Conv2d weight: (Cout, Cin, kh, kw); ConvTranspose2d weight: (Cin, Cout, kh, kw)
    params["conv0"] = (uinit(ks[0], (8, 1, 3, 3), 1 * 9), uinit(ks[1], (8,), 1 * 9))
    params["conv1"] = (uinit(ks[2], (16, 8, 3, 3), 8 * 9), uinit(ks[3], (16,), 8 * 9))
    params["convDec0"] = (uinit(ks[4], (16, 8, 4, 4), 8 * 16), uinit(ks[5], (8,), 8 * 16))
    params["output"] = (uinit(ks[6], (8, 1, 4, 4), 1 * 16), uinit(ks[7], (1,), 1 * 16))
    return params


if __name__ == "__main__":
    key = jax.random.PRNGKey(0)
    kx, kpk = jax.random.split(key)
    x = jax.random.normal(kx, (2, 1, 16, 16), jnp.float32)
    params = init_params(kpk)

    kparams = prepare_kernel_params(params)   # one-off weight pre-transform
    y = jax.block_until_ready(cnn_class_forward(x, kparams))

    assert y.shape == (2, 1, 16, 16), y.shape
    assert bool(jnp.all(jnp.isfinite(y)))
    assert bool(jnp.all((y >= 0.0) & (y <= 1.0)))   # sigmoid output range

    ref = jax.block_until_ready(reference_forward(x, params))
    assert bool(jnp.allclose(y, ref, atol=2e-2, rtol=2e-2)), \
        float(jnp.max(jnp.abs(y - ref)))
    print("KERNEL_OK")
</pallas_src>

<mosaic_0001>
module attributes {stable_mosaic.version = 11 : i64} {
  func.func @_cnn_ae_kernel(%arg0: i32, %arg1: memref<1x18x16xf32, #tpu.memory_space<vmem>>, %arg2: memref<3x16x128xbf16, #tpu.memory_space<vmem>>, %arg3: memref<1x128xf32, #tpu.memory_space<vmem>>, %arg4: memref<3x64x128xbf16, #tpu.memory_space<vmem>>, %arg5: memref<1x128xf32, #tpu.memory_space<vmem>>, %arg6: memref<3x64x128xbf16, #tpu.memory_space<vmem>>, %arg7: memref<1x128xf32, #tpu.memory_space<vmem>>, %arg8: memref<3x128x64xbf16, #tpu.memory_space<vmem>>, %arg9: memref<1x64xf32, #tpu.memory_space<vmem>>, %arg10: memref<1x4x64xf32, #tpu.memory_space<vmem>>) attributes {dimension_semantics = [#tpu.dimension_semantics<parallel>], iteration_bounds = array<i64: 2>, scalar_prefetch = 0 : i64, scratch_operands = 0 : i64, tpu.core_type = #tpu.core_type<tc>, window_params = [{transform_indices = @transform_0, window_bounds = array<i64: 1, 18, 16>}, {pipeline_mode = #tpu.pipeline_mode<synchronous>, transform_indices = @transform_1, window_bounds = array<i64: 3, 16, 128>}, {pipeline_mode = #tpu.pipeline_mode<synchronous>, transform_indices = @transform_2, window_bounds = array<i64: 1, 128>}, {pipeline_mode = #tpu.pipeline_mode<synchronous>, transform_indices = @transform_3, window_bounds = array<i64: 3, 64, 128>}, {pipeline_mode = #tpu.pipeline_mode<synchronous>, transform_indices = @transform_4, window_bounds = array<i64: 1, 128>}, {pipeline_mode = #tpu.pipeline_mode<synchronous>, transform_indices = @transform_5, window_bounds = array<i64: 3, 64, 128>}, {pipeline_mode = #tpu.pipeline_mode<synchronous>, transform_indices = @transform_6, window_bounds = array<i64: 1, 128>}, {pipeline_mode = #tpu.pipeline_mode<synchronous>, transform_indices = @transform_7, window_bounds = array<i64: 3, 128, 64>}, {pipeline_mode = #tpu.pipeline_mode<synchronous>, transform_indices = @transform_8, window_bounds = array<i64: 1, 64>}, {transform_indices = @transform_9, window_bounds = array<i64: 1, 4, 64>}]} {
    %c0 = arith.constant 0 : index
    %c0_0 = arith.constant 0 : index
    %c0_1 = arith.constant 0 : index
    %0 = vector.load %arg1[%c0, %c0_0, %c0_1] : memref<1x18x16xf32, #tpu.memory_space<vmem>>, vector<1x18x16xf32>
    %1 = vector.shape_cast %0 : vector<1x18x16xf32> to vector<18x16xf32>
    %2 = vector.extract_strided_slice %1 {offsets = [0, 0], sizes = [16, 16], strides = [1, 1]} : vector<18x16xf32> to vector<16x16xf32>
    %3 = arith.truncf %2 : vector<16x16xf32> to vector<16x16xbf16>
    %c0_2 = arith.constant 0 : index
    %c0_3 = arith.constant 0 : index
    %c0_4 = arith.constant 0 : index
    %4 = vector.load %arg2[%c0_2, %c0_3, %c0_4] : memref<3x16x128xbf16, #tpu.memory_space<vmem>>, vector<1x16x128xbf16>
    %5 = vector.shape_cast %4 : vector<1x16x128xbf16> to vector<16x128xbf16>
    %cst = arith.constant dense<0.000000e+00> : vector<16x128xf32>
    %6 = tpu.matmul %3, %5, %cst {dimension_numbers = #tpu.dot_dimension_numbers<[1], [0], [0], [1], [0, 0, 1, 1], [], []>} : vector<16x16xbf16>, vector<16x128xbf16>, vector<16x128xf32> -> vector<16x128xf32>
    %7 = vector.extract_strided_slice %1 {offsets = [1, 0], sizes = [16, 16], strides = [1, 1]} : vector<18x16xf32> to vector<16x16xf32>
    %8 = arith.truncf %7 : vector<16x16xf32> to vector<16x16xbf16>
    %c1 = arith.constant 1 : index
    %c0_5 = arith.constant 0 : index
    %c0_6 = arith.constant 0 : index
    %9 = vector.load %arg2[%c1, %c0_5, %c0_6] : memref<3x16x128xbf16, #tpu.memory_space<vmem>>, vector<1x16x128xbf16>
    %10 = vector.shape_cast %9 : vector<1x16x128xbf16> to vector<16x128xbf16>
    %cst_7 = arith.constant dense<0.000000e+00> : vector<16x128xf32>
    %11 = tpu.matmul %8, %10, %cst_7 {dimension_numbers = #tpu.dot_dimension_numbers<[1], [0], [0], [1], [0, 0, 1, 1], [], []>} : vector<16x16xbf16>, vector<16x128xbf16>, vector<16x128xf32> -> vector<16x128xf32>
    %12 = arith.addf %6, %11 : vector<16x128xf32>
    %13 = vector.extract_strided_slice %1 {offsets = [2, 0], sizes = [16, 16], strides = [1, 1]} : vector<18x16xf32> to vector<16x16xf32>
    %14 = arith.truncf %13 : vector<16x16xf32> to vector<16x16xbf16>
    %c2 = arith.constant 2 : index
    %c0_8 = arith.constant 0 : index
    %c0_9 = arith.constant 0 : index
    %15 = vector.load %arg2[%c2, %c0_8, %c0_9] : memref<3x16x128xbf16, #tpu.memory_space<vmem>>, vector<1x16x128xbf16>
    %16 = vector.shape_cast %15 : vector<1x16x128xbf16> to vector<16x128xbf16>
    %cst_10 = arith.constant dense<0.000000e+00> : vector<16x128xf32>
    %17 = tpu.matmul %14, %16, %cst_10 {dimension_numbers = #tpu.dot_dimension_numbers<[1], [0], [0], [1], [0, 0, 1, 1], [], []>} : vector<16x16xbf16>, vector<16x128xbf16>, vector<16x128xf32> -> vector<16x128xf32>
    %18 = arith.addf %12, %17 : vector<16x128xf32>
    %c0_11 = arith.constant 0 : index
    %c0_12 = arith.constant 0 : index
    %19 = vector.load %arg3[%c0_11, %c0_12] : memref<1x128xf32, #tpu.memory_space<vmem>>, vector<1x128xf32>
    %20 = vector.broadcast %19 : vector<1x128xf32> to vector<16x128xf32>
    %21 = arith.addf %18, %20 : vector<16x128xf32>
    %22 = vector.extract_strided_slice %21 {offsets = [0, 0], sizes = [1, 128], strides = [1, 1]} : vector<16x128xf32> to vector<1x128xf32>
    %23 = vector.extract_strided_slice %21 {offsets = [1, 0], sizes = [1, 128], strides = [1, 1]} : vector<16x128xf32> to vector<1x128xf32>
    %24 = arith.maximumf %22, %23 : vector<1x128xf32>
    %25 = vector.extract_strided_slice %21 {offsets = [2, 0], sizes = [1, 128], strides = [1, 1]} : vector<16x128xf32> to vector<1x128xf32>
    %26 = vector.extract_strided_slice %21 {offsets = [3, 0], sizes = [1, 128], strides = [1, 1]} : vector<16x128xf32> to vector<1x128xf32>
    %27 = arith.maximumf %25, %26 : vector<1x128xf32>
    %28 = vector.extract_strided_slice %21 {offsets = [4, 0], sizes = [1, 128], strides = [1, 1]} : vector<16x128xf32> to vector<1x128xf32>
    %29 = vector.extract_strided_slice %21 {offsets = [5, 0], sizes = [1, 128], strides = [1, 1]} : vector<16x128xf32> to vector<1x128xf32>
    %30 = arith.maximumf %28, %29 : vector<1x128xf32>
    %31 = vector.extract_strided_slice %21 {offsets = [6, 0], sizes = [1, 128], strides = [1, 1]} : vector<16x128xf32> to vector<1x128xf32>
    %32 = vector.extract_strided_slice %21 {offsets = [7, 0], sizes = [1, 128], strides = [1, 1]} : vector<16x128xf32> to vector<1x128xf32>
    %33 = arith.maximumf %31, %32 : vector<1x128xf32>
    %34 = vector.extract_strided_slice %21 {offsets = [8, 0], sizes = [1, 128], strides = [1, 1]} : vector<16x128xf32> to vector<1x128xf32>
    %35 = vector.extract_strided_slice %21 {offsets = [9, 0], sizes = [1, 128], strides = [1, 1]} : vector<16x128xf32> to vector<1x128xf32>
    %36 = arith.maximumf %34, %35 : vector<1x128xf32>
    %37 = vector.extract_strided_slice %21 {offsets = [10, 0], sizes = [1, 128], strides = [1, 1]} : vector<16x128xf32> to vector<1x128xf32>
    %38 = vector.extract_strided_slice %21 {offsets = [11, 0], sizes = [1, 128], strides = [1, 1]} : vector<16x128xf32> to vector<1x128xf32>
    %39 = arith.maximumf %37, %38 : vector<1x128xf32>
    %40 = vector.extract_strided_slice %21 {offsets = [12, 0], sizes = [1, 128], strides = [1, 1]} : vector<16x128xf32> to vector<1x128xf32>
    %41 = vector.extract_strided_slice %21 {offsets = [13, 0], sizes = [1, 128], strides = [1, 1]} : vector<16x128xf32> to vector<1x128xf32>
    %42 = arith.maximumf %40, %41 : vector<1x128xf32>
    %43 = vector.extract_strided_slice %21 {offsets = [14, 0], sizes = [1, 128], strides = [1, 1]} : vector<16x128xf32> to vector<1x128xf32>
    %44 = vector.extract_strided_slice %21 {offsets = [15, 0], sizes = [1, 128], strides = [1, 1]} : vector<16x128xf32> to vector<1x128xf32>
    %45 = arith.maximumf %43, %44 : vector<1x128xf32>
    %46 = tpu.concatenate %24, %27, %30, %33, %36, %39, %42, %45 in 0 : vector<1x128xf32>, vector<1x128xf32>, vector<1x128xf32>, vector<1x128xf32>, vector<1x128xf32>, vector<1x128xf32>, vector<1x128xf32>, vector<1x128xf32> -> vector<8x128xf32>
    %47 = vector.extract_strided_slice %46 {offsets = [0, 0], sizes = [8, 8], strides = [1, 1]} : vector<8x128xf32> to vector<8x8xf32>
    %48 = vector.extract_strided_slice %46 {offsets = [0, 8], sizes = [8, 8], strides = [1, 1]} : vector<8x128xf32> to vector<8x8xf32>
    %49 = arith.maximumf %47, %48 : vector<8x8xf32>
    %50 = vector.extract_strided_slice %46 {offsets = [0, 16], sizes = [8, 8], strides = [1, 1]} : vector<8x128xf32> to vector<8x8xf32>
    %51 = vector.extract_strided_slice %46 {offsets = [0, 24], sizes = [8, 8], strides = [1, 1]} : vector<8x128xf32> to vector<8x8xf32>
    %52 = arith.maximumf %50, %51 : vector<8x8xf32>
    %53 = vector.extract_strided_slice %46 {offsets = [0, 32], sizes = [8, 8], strides = [1, 1]} : vector<8x128xf32> to vector<8x8xf32>
    %54 = vector.extract_strided_slice %46 {offsets = [0, 40], sizes = [8, 8], strides = [1, 1]} : vector<8x128xf32> to vector<8x8xf32>
    %55 = arith.maximumf %53, %54 : vector<8x8xf32>
    %56 = vector.extract_strided_slice %46 {offsets = [0, 48], sizes = [8, 8], strides = [1, 1]} : vector<8x128xf32> to vector<8x8xf32>
    %57 = vector.extract_strided_slice %46 {offsets = [0, 56], sizes = [8, 8], strides = [1, 1]} : vector<8x128xf32> to vector<8x8xf32>
    %58 = arith.maximumf %56, %57 : vector<8x8xf32>
    %59 = vector.extract_strided_slice %46 {offsets = [0, 64], sizes = [8, 8], strides = [1, 1]} : vector<8x128xf32> to vector<8x8xf32>
    %60 = vector.extract_strided_slice %46 {offsets = [0, 72], sizes = [8, 8], strides = [1, 1]} : vector<8x128xf32> to vector<8x8xf32>
    %61 = arith.maximumf %59, %60 : vector<8x8xf32>
    %62 = vector.extract_strided_slice %46 {offsets = [0, 80], sizes = [8, 8], strides = [1, 1]} : vector<8x128xf32> to vector<8x8xf32>
    %63 = vector.extract_strided_slice %46 {offsets = [0, 88], sizes = [8, 8], strides = [1, 1]} : vector<8x128xf32> to vector<8x8xf32>
    %64 = arith.maximumf %62, %63 : vector<8x8xf32>
    %65 = vector.extract_strided_slice %46 {offsets = [0, 96], sizes = [8, 8], strides = [1, 1]} : vector<8x128xf32> to vector<8x8xf32>
    %66 = vector.extract_strided_slice %46 {offsets = [0, 104], sizes = [8, 8], strides = [1, 1]} : vector<8x128xf32> to vector<8x8xf32>
    %67 = arith.maximumf %65, %66 : vector<8x8xf32>
    %68 = vector.extract_strided_slice %46 {offsets = [0, 112], sizes = [8, 8], strides = [1, 1]} : vector<8x128xf32> to vector<8x8xf32>
    %69 = vector.extract_strided_slice %46 {offsets = [0, 120], sizes = [8, 8], strides = [1, 1]} : vector<8x128xf32> to vector<8x8xf32>
    %70 = arith.maximumf %68, %69 : vector<8x8xf32>
    %71 = tpu.concatenate %49, %52, %55, %58, %61, %64, %67, %70 in 1 : vector<8x8xf32>, vector<8x8xf32>, vector<8x8xf32>, vector<8x8xf32>, vector<8x8xf32>, vector<8x8xf32>, vector<8x8xf32>, vector<8x8xf32> -> vector<8x64xf32>
    %cst_13 = arith.constant 0.000000e+00 : f32
    %72 = vector.broadcast %cst_13 : f32 to vector<8x64xf32>
    %73 = arith.maximumf %71, %72 : vector<8x64xf32>
    %cst_14 = arith.constant 0.000000e+00 : f32
    %74 = vector.broadcast %cst_14 : f32 to vector<1x64xf32>
    %75 = tpu.concatenate %74, %73, %74 in 0 : vector<1x64xf32>, vector<8x64xf32>, vector<1x64xf32> -> vector<10x64xf32>
    %76 = vector.extract_strided_slice %75 {offsets = [0, 0], sizes = [8, 64], strides = [1, 1]} : vector<10x64xf32> to vector<8x64xf32>
    %77 = arith.truncf %76 : vector<8x64xf32> to vector<8x64xbf16>
    %c0_15 = arith.constant 0 : index
    %c0_16 = arith.constant 0 : index
    %c0_17 = arith.constant 0 : index
    %78 = vector.load %arg4[%c0_15, %c0_16, %c0_17] : memref<3x64x128xbf16, #tpu.memory_space<vmem>>, vector<1x64x128xbf16>
    %79 = vector.shape_cast %78 : vector<1x64x128xbf16> to vector<64x128xbf16>
    %cst_18 = arith.constant dense<0.000000e+00> : vector<8x128xf32>
    %80 = tpu.matmul %77, %79, %cst_18 {dimension_numbers = #tpu.dot_dimension_numbers<[1], [0], [0], [1], [0, 0, 1, 1], [], []>} : vector<8x64xbf16>, vector<64x128xbf16>, vector<8x128xf32> -> vector<8x128xf32>
    %81 = vector.extract_strided_slice %75 {offsets = [1, 0], sizes = [8, 64], strides = [1, 1]} : vector<10x64xf32> to vector<8x64xf32>
    %82 = arith.truncf %81 : vector<8x64xf32> to vector<8x64xbf16>
    %c1_19 = arith.constant 1 : index
    %c0_20 = arith.constant 0 : index
    %c0_21 = arith.constant 0 : index
    %83 = vector.load %arg4[%c1_19, %c0_20, %c0_21] : memref<3x64x128xbf16, #tpu.memory_space<vmem>>, vector<1x64x128xbf16>
    %84 = vector.shape_cast %83 : vector<1x64x128xbf16> to vector<64x128xbf16>
    %cst_22 = arith.constant dense<0.000000e+00> : vector<8x128xf32>
    %85 = tpu.matmul %82, %84, %cst_22 {dimension_numbers = #tpu.dot_dimension_numbers<[1], [0], [0], [1], [0, 0, 1, 1], [], []>} : vector<8x64xbf16>, vector<64x128xbf16>, vector<8x128xf32> -> vector<8x128xf32>
    %86 = arith.addf %80, %85 : vector<8x128xf32>
    %87 = vector.extract_strided_slice %75 {offsets = [2, 0], sizes = [8, 64], strides = [1, 1]} : vector<10x64xf32> to vector<8x64xf32>
    %88 = arith.truncf %87 : vector<8x64xf32> to vector<8x64xbf16>
    %c2_23 = arith.constant 2 : index
    %c0_24 = arith.constant 0 : index
    %c0_25 = arith.constant 0 : index
    %89 = vector.load %arg4[%c2_23, %c0_24, %c0_25] : memref<3x64x128xbf16, #tpu.memory_space<vmem>>, vector<1x64x128xbf16>
    %90 = vector.shape_cast %89 : vector<1x64x128xbf16> to vector<64x128xbf16>
    %cst_26 = arith.constant dense<0.000000e+00> : vector<8x128xf32>
    %91 = tpu.matmul %88, %90, %cst_26 {dimension_numbers = #tpu.dot_dimension_numbers<[1], [0], [0], [1], [0, 0, 1, 1], [], []>} : vector<8x64xbf16>, vector<64x128xbf16>, vector<8x128xf32> -> vector<8x128xf32>
    %92 = arith.addf %86, %91 : vector<8x128xf32>
    %c0_27 = arith.constant 0 : index
    %c0_28 = arith.constant 0 : index
    %93 = vector.load %arg5[%c0_27, %c0_28] : memref<1x128xf32, #tpu.memory_space<vmem>>, vector<1x128xf32>
    %94 = vector.broadcast %93 : vector<1x128xf32> to vector<8x128xf32>
    %95 = arith.addf %92, %94 : vector<8x128xf32>
    %96 = vector.extract_strided_slice %95 {offsets = [0, 0], sizes = [1, 128], strides = [1, 1]} : vector<8x128xf32> to vector<1x128xf32>
    %97 = vector.extract_strided_slice %95 {offsets = [1, 0], sizes = [1, 128], strides = [1, 1]} : vector<8x128xf32> to vector<1x128xf32>
    %98 = arith.maximumf %96, %97 : vector<1x128xf32>
    %99 = vector.extract_strided_slice %95 {offsets = [2, 0], sizes = [1, 128], strides = [1, 1]} : vector<8x128xf32> to vector<1x128xf32>
    %100 = vector.extract_strided_slice %95 {offsets = [3, 0], sizes = [1, 128], strides = [1, 1]} : vector<8x128xf32> to vector<1x128xf32>
    %101 = arith.maximumf %99, %100 : vector<1x128xf32>
    %102 = vector.extract_strided_slice %95 {offsets = [4, 0], sizes = [1, 128], strides = [1, 1]} : vector<8x128xf32> to vector<1x128xf32>
    %103 = vector.extract_strided_slice %95 {offsets = [5, 0], sizes = [1, 128], strides = [1, 1]} : vector<8x128xf32> to vector<1x128xf32>
    %104 = arith.maximumf %102, %103 : vector<1x128xf32>
    %105 = vector.extract_strided_slice %95 {offsets = [6, 0], sizes = [1, 128], strides = [1, 1]} : vector<8x128xf32> to vector<1x128xf32>
    %106 = vector.extract_strided_slice %95 {offsets = [7, 0], sizes = [1, 128], strides = [1, 1]} : vector<8x128xf32> to vector<1x128xf32>
    %107 = arith.maximumf %105, %106 : vector<1x128xf32>
    %108 = tpu.concatenate %98, %101, %104, %107 in 0 : vector<1x128xf32>, vector<1x128xf32>, vector<1x128xf32>, vector<1x128xf32> -> vector<4x128xf32>
    %109 = vector.extract_strided_slice %108 {offsets = [0, 0], sizes = [4, 16], strides = [1, 1]} : vector<4x128xf32> to vector<4x16xf32>
    %110 = vector.extract_strided_slice %108 {offsets = [0, 16], sizes = [4, 16], strides = [1, 1]} : vector<4x128xf32> to vector<4x16xf32>
    %111 = arith.maximumf %109, %110 : vector<4x16xf32>
    %112 = vector.extract_strided_slice %108 {offsets = [0, 32], sizes = [4, 16], strides = [1, 1]} : vector<4x128xf32> to vector<4x16xf32>
    %113 = vector.extract_strided_slice %108 {offsets = [0, 48], sizes = [4, 16], strides = [1, 1]} : vector<4x128xf32> to vector<4x16xf32>
    %114 = arith.maximumf %112, %113 : vector<4x16xf32>
    %115 = vector.extract_strided_slice %108 {offsets = [0, 64], sizes = [4, 16], strides = [1, 1]} : vector<4x128xf32> to vector<4x16xf32>
    %116 = vector.extract_strided_slice %108 {offsets = [0, 80], sizes = [4, 16], strides = [1, 1]} : vector<4x128xf32> to vector<4x16xf32>
    %117 = arith.maximumf %115, %116 : vector<4x16xf32>
    %118 = vector.extract_strided_slice %108 {offsets = [0, 96], sizes = [4, 16], strides = [1, 1]} : vector<4x128xf32> to vector<4x16xf32>
    %119 = vector.extract_strided_slice %108 {offsets = [0, 112], sizes = [4, 16], strides = [1, 1]} : vector<4x128xf32> to vector<4x16xf32>
    %120 = arith.maximumf %118, %119 : vector<4x16xf32>
    %121 = tpu.concatenate %111, %114, %117, %120 in 1 : vector<4x16xf32>, vector<4x16xf32>, vector<4x16xf32>, vector<4x16xf32> -> vector<4x64xf32>
    %cst_29 = arith.constant 0.000000e+00 : f32
    %122 = vector.broadcast %cst_29 : f32 to vector<4x64xf32>
    %123 = arith.maximumf %121, %122 : vector<4x64xf32>
    %cst_30 = arith.constant 0.000000e+00 : f32
    %124 = vector.broadcast %cst_30 : f32 to vector<1x64xf32>
    %125 = tpu.concatenate %124, %123, %124 in 0 : vector<1x64xf32>, vector<4x64xf32>, vector<1x64xf32> -> vector<6x64xf32>
    %126 = vector.extract_strided_slice %125 {offsets = [0, 0], sizes = [4, 64], strides = [1, 1]} : vector<6x64xf32> to vector<4x64xf32>
    %127 = arith.truncf %126 : vector<4x64xf32> to vector<4x64xbf16>
    %c0_31 = arith.constant 0 : index
    %c0_32 = arith.constant 0 : index
    %c0_33 = arith.constant 0 : index
    %128 = vector.load %arg6[%c0_31, %c0_32, %c0_33] : memref<3x64x128xbf16, #tpu.memory_space<vmem>>, vector<1x64x128xbf16>
    %129 = vector.shape_cast %128 : vector<1x64x128xbf16> to vector<64x128xbf16>
    %cst_34 = arith.constant dense<0.000000e+00> : vector<4x128xf32>
    %130 = tpu.matmul %127, %129, %cst_34 {dimension_numbers = #tpu.dot_dimension_numbers<[1], [0], [0], [1], [0, 0, 1, 1], [], []>} : vector<4x64xbf16>, vector<64x128xbf16>, vector<4x128xf32> -> vector<4x128xf32>
    %131 = vector.extract_strided_slice %125 {offsets = [1, 0], sizes = [4, 64], strides = [1, 1]} : vector<6x64xf32> to vector<4x64xf32>
    %132 = arith.truncf %131 : vector<4x64xf32> to vector<4x64xbf16>
    %c1_35 = arith.constant 1 : index
    %c0_36 = arith.constant 0 : index
    %c0_37 = arith.constant 0 : index
    %133 = vector.load %arg6[%c1_35, %c0_36, %c0_37] : memref<3x64x128xbf16, #tpu.memory_space<vmem>>, vector<1x64x128xbf16>
    %134 = vector.shape_cast %133 : vector<1x64x128xbf16> to vector<64x128xbf16>
    %cst_38 = arith.constant dense<0.000000e+00> : vector<4x128xf32>
    %135 = tpu.matmul %132, %134, %cst_38 {dimension_numbers = #tpu.dot_dimension_numbers<[1], [0], [0], [1], [0, 0, 1, 1], [], []>} : vector<4x64xbf16>, vector<64x128xbf16>, vector<4x128xf32> -> vector<4x128xf32>
    %136 = arith.addf %130, %135 : vector<4x128xf32>
    %137 = vector.extract_strided_slice %125 {offsets = [2, 0], sizes = [4, 64], strides = [1, 1]} : vector<6x64xf32> to vector<4x64xf32>
    %138 = arith.truncf %137 : vector<4x64xf32> to vector<4x64xbf16>
    %c2_39 = arith.constant 2 : index
    %c0_40 = arith.constant 0 : index
    %c0_41 = arith.constant 0 : index
    %139 = vector.load %arg6[%c2_39, %c0_40, %c0_41] : memref<3x64x128xbf16, #tpu.memory_space<vmem>>, vector<1x64x128xbf16>
    %140 = vector.shape_cast %139 : vector<1x64x128xbf16> to vector<64x128xbf16>
    %cst_42 = arith.constant dense<0.000000e+00> : vector<4x128xf32>
    %141 = tpu.matmul %138, %140, %cst_42 {dimension_numbers = #tpu.dot_dimension_numbers<[1], [0], [0], [1], [0, 0, 1, 1], [], []>} : vector<4x64xbf16>, vector<64x128xbf16>, vector<4x128xf32> -> vector<4x128xf32>
    %142 = arith.addf %136, %141 : vector<4x128xf32>
    %c0_43 = arith.constant 0 : index
    %c0_44 = arith.constant 0 : index
    %143 = vector.load %arg7[%c0_43, %c0_44] : memref<1x128xf32, #tpu.memory_space<vmem>>, vector<1x128xf32>
    %144 = vector.broadcast %143 : vector<1x128xf32> to vector<4x128xf32>
    %145 = arith.addf %142, %144 : vector<4x128xf32>
    %cst_45 = arith.constant 0.000000e+00 : f32
    %146 = vector.broadcast %cst_45 : f32 to vector<4x128xf32>
    %147 = arith.maximumf %145, %146 : vector<4x128xf32>
    %cst_46 = arith.constant 0.000000e+00 : f32
    %148 = vector.broadcast %cst_46 : f32 to vector<1x128xf32>
    %149 = tpu.concatenate %148, %147, %148 in 0 : vector<1x128xf32>, vector<4x128xf32>, vector<1x128xf32> -> vector<6x128xf32>
    %150 = vector.extract_strided_slice %149 {offsets = [0, 0], sizes = [4, 128], strides = [1, 1]} : vector<6x128xf32> to vector<4x128xf32>
    %151 = arith.truncf %150 : vector<4x128xf32> to vector<4x128xbf16>
    %c0_47 = arith.constant 0 : index
    %c0_48 = arith.constant 0 : index
    %c0_49 = arith.constant 0 : index
    %152 = vector.load %arg8[%c0_47, %c0_48, %c0_49] : memref<3x128x64xbf16, #tpu.memory_space<vmem>>, vector<1x128x64xbf16>
    %153 = vector.shape_cast %152 : vector<1x128x64xbf16> to vector<128x64xbf16>
    %cst_50 = arith.constant dense<0.000000e+00> : vector<4x64xf32>
    %154 = tpu.matmul %151, %153, %cst_50 {dimension_numbers = #tpu.dot_dimension_numbers<[1], [0], [0], [1], [0, 0, 1, 1], [], []>} : vector<4x128xbf16>, vector<128x64xbf16>, vector<4x64xf32> -> vector<4x64xf32>
    %155 = vector.extract_strided_slice %149 {offsets = [1, 0], sizes = [4, 128], strides = [1, 1]} : vector<6x128xf32> to vector<4x128xf32>
    %156 = arith.truncf %155 : vector<4x128xf32> to vector<4x128xbf16>
    %c1_51 = arith.constant 1 : index
    %c0_52 = arith.constant 0 : index
    %c0_53 = arith.constant 0 : index
    %157 = vector.load %arg8[%c1_51, %c0_52, %c0_53] : memref<3x128x64xbf16, #tpu.memory_space<vmem>>, vector<1x128x64xbf16>
    %158 = vector.shape_cast %157 : vector<1x128x64xbf16> to vector<128x64xbf16>
    %cst_54 = arith.constant dense<0.000000e+00> : vector<4x64xf32>
    %159 = tpu.matmul %156, %158, %cst_54 {dimension_numbers = #tpu.dot_dimension_numbers<[1], [0], [0], [1], [0, 0, 1, 1], [], []>} : vector<4x128xbf16>, vector<128x64xbf16>, vector<4x64xf32> -> vector<4x64xf32>
    %160 = arith.addf %154, %159 : vector<4x64xf32>
    %161 = vector.extract_strided_slice %149 {offsets = [2, 0], sizes = [4, 128], strides = [1, 1]} : vector<6x128xf32> to vector<4x128xf32>
    %162 = arith.truncf %161 : vector<4x128xf32> to vector<4x128xbf16>
    %c2_55 = arith.constant 2 : index
    %c0_56 = arith.constant 0 : index
    %c0_57 = arith.constant 0 : index
    %163 = vector.load %arg8[%c2_55, %c0_56, %c0_57] : memref<3x128x64xbf16, #tpu.memory_space<vmem>>, vector<1x128x64xbf16>
    %164 = vector.shape_cast %163 : vector<1x128x64xbf16> to vector<128x64xbf16>
    %cst_58 = arith.constant dense<0.000000e+00> : vector<4x64xf32>
    %165 = tpu.matmul %162, %164, %cst_58 {dimension_numbers = #tpu.dot_dimension_numbers<[1], [0], [0], [1], [0, 0, 1, 1], [], []>} : vector<4x128xbf16>, vector<128x64xbf16>, vector<4x64xf32> -> vector<4x64xf32>
    %166 = arith.addf %160, %165 : vector<4x64xf32>
    %c0_59 = arith.constant 0 : index
    %c0_60 = arith.constant 0 : index
    %167 = vector.load %arg9[%c0_59, %c0_60] : memref<1x64xf32, #tpu.memory_space<vmem>>, vector<1x64xf32>
    %168 = vector.broadcast %167 : vector<1x64xf32> to vector<4x64xf32>
    %169 = arith.addf %166, %168 : vector<4x64xf32>
    %170 = arith.negf %169 : vector<4x64xf32>
    %171 = math.exp %170 : vector<4x64xf32>
    %cst_61 = arith.constant 1.000000e+00 : f32
    %172 = vector.broadcast %cst_61 : f32 to vector<4x64xf32>
    %173 = arith.addf %172, %171 : vector<4x64xf32>
    %174 = arith.divf %172, %173 : vector<4x64xf32>
    %c0_62 = arith.constant 0 : index
    %c0_63 = arith.constant 0 : index
    %c0_64 = arith.constant 0 : index
    %175 = vector.load %arg10[%c0_62, %c0_63, %c0_64] : memref<1x4x64xf32, #tpu.memory_space<vmem>>, vector<1x4x64xf32>
    %176 = vector.shape_cast %175 : vector<1x4x64xf32> to vector<4x64xf32>
    %177 = vector.shape_cast %174 : vector<4x64xf32> to vector<1x4x64xf32>
    tpu.vector_store %arg10[%c0_62, %c0_63, %c0_64], %177 {strides = array<i32>} : memref<1x4x64xf32, #tpu.memory_space<vmem>>, vector<1x4x64xf32>,
    return
  }
  func.func @transform_0(%arg0: i32) -> (i32, i32, i32) {
    %c0_i32 = arith.constant 0 : i32
    %c0_i32_0 = arith.constant 0 : i32
    %c0_i32_1 = arith.constant 0 : i32
    return %arg0, %c0_i32, %c0_i32_0 : i32, i32, i32
  }
  func.func @transform_1(%arg0: i32) -> (i32, i32, i32) {
    %c0_i32 = arith.constant 0 : i32
    %c0_i32_0 = arith.constant 0 : i32
    %c0_i32_1 = arith.constant 0 : i32
    %c0_i32_2 = arith.constant 0 : i32
    return %c0_i32, %c0_i32_0, %c0_i32_1 : i32, i32, i32
  }
  func.func @transform_2(%arg0: i32) -> (i32, i32) {
    %c0_i32 = arith.constant 0 : i32
    %c0_i32_0 = arith.constant 0 : i32
    %c0_i32_1 = arith.constant 0 : i32
    return %c0_i32, %c0_i32_0 : i32, i32
  }
  func.func @transform_3(%arg0: i32) -> (i32, i32, i32) {
    %c0_i32 = arith.constant 0 : i32
    %c0_i32_0 = arith.constant 0 : i32
    %c0_i32_1 = arith.constant 0 : i32
    %c0_i32_2 = arith.constant 0 : i32
    return %c0_i32, %c0_i32_0, %c0_i32_1 : i32, i32, i32
  }
  func.func @transform_4(%arg0: i32) -> (i32, i32) {
    %c0_i32 = arith.constant 0 : i32
    %c0_i32_0 = arith.constant 0 : i32
    %c0_i32_1 = arith.constant 0 : i32
    return %c0_i32, %c0_i32_0 : i32, i32
  }
  func.func @transform_5(%arg0: i32) -> (i32, i32, i32) {
    %c0_i32 = arith.constant 0 : i32
    %c0_i32_0 = arith.constant 0 : i32
    %c0_i32_1 = arith.constant 0 : i32
    %c0_i32_2 = arith.constant 0 : i32
    return %c0_i32, %c0_i32_0, %c0_i32_1 : i32, i32, i32
  }
  func.func @transform_6(%arg0: i32) -> (i32, i32) {
    %c0_i32 = arith.constant 0 : i32
    %c0_i32_0 = arith.constant 0 : i32
    %c0_i32_1 = arith.constant 0 : i32
    return %c0_i32, %c0_i32_0 : i32, i32
  }
  func.func @transform_7(%arg0: i32) -> (i32, i32, i32) {
    %c0_i32 = arith.constant 0 : i32
    %c0_i32_0 = arith.constant 0 : i32
    %c0_i32_1 = arith.constant 0 : i32
    %c0_i32_2 = arith.constant 0 : i32
    return %c0_i32, %c0_i32_0, %c0_i32_1 : i32, i32, i32
  }
  func.func @transform_8(%arg0: i32) -> (i32, i32) {
    %c0_i32 = arith.constant 0 : i32
    %c0_i32_0 = arith.constant 0 : i32
    %c0_i32_1 = arith.constant 0 : i32
    return %c0_i32, %c0_i32_0 : i32, i32
  }
  func.func @transform_9(%arg0: i32) -> (i32, i32, i32) {
    %c0_i32 = arith.constant 0 : i32
    %c0_i32_0 = arith.constant 0 : i32
    %c0_i32_1 = arith.constant 0 : i32
    return %arg0, %c0_i32, %c0_i32_0 : i32, i32, i32
  }
}

</mosaic_0001>

<llo_original>
// kernel: cnn_class_forward.1
$region0: #{cnn_class_forward.1}
  #allocation0 [shape = 'u32[]', space=smem, size = 0x4, offset = 0x4, fixed_abs, tag = 'smem constant byte address 0x4 - core index']
  #allocation1 [shape = 'u32[144,128]{1,0:T(1,128)}', space=vmem, size = 0x12000, scoped, tag = 'internal scratch']
  %s0 = inlined_call_operand.vmem [shape: f32[2,18,16], index: 0, kind: input, shape index: {}]
  %s1 = inlined_call_operand.vmem [shape: bf16[3,16,128], index: 1, kind: input, shape index: {}]
  %s2 = inlined_call_operand.vmem [shape: f32[1,128], index: 2, kind: input, shape index: {}]
  %s3 = inlined_call_operand.vmem [shape: bf16[3,64,128], index: 3, kind: input, shape index: {}]
  %s4 = inlined_call_operand.vmem [shape: f32[1,128], index: 4, kind: input, shape index: {}]
  %s5 = inlined_call_operand.vmem [shape: bf16[3,64,128], index: 5, kind: input, shape index: {}]
  %s6 = inlined_call_operand.vmem [shape: f32[1,128], index: 6, kind: input, shape index: {}]
  %s7 = inlined_call_operand.vmem [shape: bf16[3,128,64], index: 7, kind: input, shape index: {}]
  %s8 = inlined_call_operand.vmem [shape: f32[1,64], index: 8, kind: input, shape index: {}]
  %s9 = inlined_call_operand.vmem [shape: f32[2,4,64], index: 9, kind: output, shape index: {}]
  %s10 = sld [smem:[#allocation0]]
  $region69: #{cnn_class_forward.1} parent=0
    _
  %s12 = ssub.s32 1, %s10
  %s13 = scalar_select 0, %s12, %s10
  loop: start=0, step=1, limit=4
  $region2: #{cnn_class_forward.1} parent=0 // loop_pre_header
    _
  $region3: #{cnn_class_forward.1} parent=0 // loop_header
    %s15 = sphi 0, %s19
    %p16 = scmp.ge.s32.totalorder %s15, 4
    %s25 = sphi 0, %s27
    %s28 = sphi 0, %s25
    %s29 = sphi 0, %s28
    %s45 = sphi 0, %s29
    %s49 = sphi 0, %s49
    %s51 = sphi 0, %s49
    %s52 = sphi 0, %s51
    %s66 = sphi 0, %s52
    %s70 = sphi 0, %s70
    %s72 = sphi 0, %s70
    %s73 = sphi 0, %s72
    %s87 = sphi 0, %s73
    %s91 = sphi 0, %s91
    %s93 = sphi 0, %s91
    %s94 = sphi 0, %s93
    %s108 = sphi 0, %s94
    %s112 = sphi 0, %s112
    %s114 = sphi 0, %s112
    %s115 = sphi 0, %s114
    %s129 = sphi 0, %s115
    %s133 = sphi 0, %s133
    %s135 = sphi 0, %s133
    %s136 = sphi 0, %s135
    %s150 = sphi 0, %s136
    %s154 = sphi 0, %s154
    %s156 = sphi 0, %s154
    %s157 = sphi 0, %s156
    %s171 = sphi 0, %s157
    %s175 = sphi 0, %s175
    %s177 = sphi 0, %s175
    %s178 = sphi 0, %s177
    %s192 = sphi 0, %s178
    %s196 = sphi 0, %s196
    %s198 = sphi 0, %s196
    %s199 = sphi 0, %s198
    %s213 = sphi 0, %s199
    %s219 = sphi 0, %s221
    %s222 = sphi 0, %s219
    %s223 = sphi 0, %s222
    %s239 = sphi 0, %s223
  $region4: #{cnn_class_forward.1} parent=0 // loop_header_branch
    %18 = sbr.rel (%p16) target = $region8
  $region5: #{cnn_class_forward.1} parent=0 // loop_body
    %s20 = ssub.s32 %s15, 1
    %s21 = ssub.s32 %s15, 2
    %s22 = sadd.s32 %s15, 1
    %s23 = ssub.s32 %s15, %s22
    %p24 = scmp.eq.s32.totalorder %s23, 0
    %s26 = sadd.s32 %s25, 1
    %s27 = scalar_select %p24, %s25, %s26
    %p30 = pneg %p24
    %p31 = scmp.eq.s32.totalorder %s15, 1
    %p32 = por %p30, %p31
    %p33 = scmp.ne.s32.totalorder %s25, %s28
    %p34 = scmp.eq.s32.totalorder %s15, 0
    %p35 = por %p33, %p34
    %p36 = scmp.ne.s32.totalorder %s25, %s28
    %p37 = scmp.eq.s32.totalorder %s20, 1
    %p38 = por %p36, %p37
    %p39 = scmp.ne.s32.totalorder %s28, %s29
    %p40 = scmp.eq.s32.totalorder %s20, 0
    %p41 = por %p39, %p40
    %p42 = scmp.ne.s32.totalorder %s28, %s29
    %p43 = scmp.eq.s32.totalorder %s21, 1
    %p44 = por %p42, %p43
    %p46 = scmp.ne.s32.totalorder %s29, %s45
    %p47 = scmp.eq.s32.totalorder %s21, 0
    %p48 = por %p46, %p47
    %s50 = sadd.s32 %s49, 1
    %p53 = scmp.eq.s32.totalorder %s15, 1
    %p54 = scmp.ne.s32.totalorder %s49, %s51
    %p55 = scmp.eq.s32.totalorder %s15, 0
    %p56 = por %p54, %p55
    %p57 = scmp.ne.s32.totalorder %s49, %s51
    %p58 = scmp.eq.s32.totalorder %s20, 1
    %p59 = por %p57, %p58
    %p60 = scmp.ne.s32.totalorder %s51, %s52
    %p61 = scmp.eq.s32.totalorder %s20, 0
    %p62 = por %p60, %p61
    %p63 = scmp.ne.s32.totalorder %s51, %s52
    %p64 = scmp.eq.s32.totalorder %s21, 1
    %p65 = por %p63, %p64
    %p67 = scmp.ne.s32.totalorder %s52, %s66
    %p68 = scmp.eq.s32.totalorder %s21, 0
    %p69 = por %p67, %p68
    %s71 = sadd.s32 %s70, 1
    %p74 = scmp.eq.s32.totalorder %s15, 1
    %p75 = scmp.ne.s32.totalorder %s70, %s72
    %p76 = scmp.eq.s32.totalorder %s15, 0
    %p77 = por %p75, %p76
    %p78 = scmp.ne.s32.totalorder %s70, %s72
    %p79 = scmp.eq.s32.totalorder %s20, 1
    %p80 = por %p78, %p79
    %p81 = scmp.ne.s32.totalorder %s72, %s73
    %p82 = scmp.eq.s32.totalorder %s20, 0
    %p83 = por %p81, %p82
    %p84 = scmp.ne.s32.totalorder %s72, %s73
    %p85 = scmp.eq.s32.totalorder %s21, 1
    %p86 = por %p84, %p85
    %p88 = scmp.ne.s32.totalorder %s73, %s87
    %p89 = scmp.eq.s32.totalorder %s21, 0
    %p90 = por %p88, %p89
    %s92 = sadd.s32 %s91, 1
    %p95 = scmp.eq.s32.totalorder %s15, 1
    %p96 = scmp.ne.s32.totalorder %s91, %s93
    %p97 = scmp.eq.s32.totalorder %s15, 0
    %p98 = por %p96, %p97
    %p99 = scmp.ne.s32.totalorder %s91, %s93
    %p100 = scmp.eq.s32.totalorder %s20, 1
    %p101 = por %p99, %p100
    %p102 = scmp.ne.s32.totalorder %s93, %s94
    %p103 = scmp.eq.s32.totalorder %s20, 0
    %p104 = por %p102, %p103
    %p105 = scmp.ne.s32.totalorder %s93, %s94
    %p106 = scmp.eq.s32.totalorder %s21, 1
    %p107 = por %p105, %p106
    %p109 = scmp.ne.s32.totalorder %s94, %s108
    %p110 = scmp.eq.s32.totalorder %s21, 0
    %p111 = por %p109, %p110
    %s113 = sadd.s32 %s112, 1
    %p116 = scmp.eq.s32.totalorder %s15, 1
    %p117 = scmp.ne.s32.totalorder %s112, %s114
    %p118 = scmp.eq.s32.totalorder %s15, 0
    %p119 = por %p117, %p118
    %p120 = scmp.ne.s32.totalorder %s112, %s114
    %p121 = scmp.eq.s32.totalorder %s20, 1
    %p122 = por %p120, %p121
    %p123 = scmp.ne.s32.totalorder %s114, %s115
    %p124 = scmp.eq.s32.totalorder %s20, 0
    %p125 = por %p123, %p124
    %p126 = scmp.ne.s32.totalorder %s114, %s115
    %p127 = scmp.eq.s32.totalorder %s21, 1
    %p128 = por %p126, %p127
    %p130 = scmp.ne.s32.totalorder %s115, %s129
    %p131 = scmp.eq.s32.totalorder %s21, 0
    %p132 = por %p130, %p131
    %s134 = sadd.s32 %s133, 1
    %p137 = scmp.eq.s32.totalorder %s15, 1
    %p138 = scmp.ne.s32.totalorder %s133, %s135
    %p139 = scmp.eq.s32.totalorder %s15, 0
    %p140 = por %p138, %p139
    %p141 = scmp.ne.s32.totalorder %s133, %s135
    %p142 = scmp.eq.s32.totalorder %s20, 1
    %p143 = por %p141, %p142
    %p144 = scmp.ne.s32.totalorder %s135, %s136
    %p145 = scmp.eq.s32.totalorder %s20, 0
    %p146 = por %p144, %p145
    %p147 = scmp.ne.s32.totalorder %s135, %s136
    %p148 = scmp.eq.s32.totalorder %s21, 1
    %p149 = por %p147, %p148
    %p151 = scmp.ne.s32.totalorder %s136, %s150
    %p152 = scmp.eq.s32.totalorder %s21, 0
    %p153 = por %p151, %p152
    %s155 = sadd.s32 %s154, 1
    %p158 = scmp.eq.s32.totalorder %s15, 1
    %p159 = scmp.ne.s32.totalorder %s154, %s156
    %p160 = scmp.eq.s32.totalorder %s15, 0
    %p161 = por %p159, %p160
    %p162 = scmp.ne.s32.totalorder %s154, %s156
    %p163 = scmp.eq.s32.totalorder %s20, 1
    %p164 = por %p162, %p163
    %p165 = scmp.ne.s32.totalorder %s156, %s157
    %p166 = scmp.eq.s32.totalorder %s20, 0
    %p167 = por %p165, %p166
    %p168 = scmp.ne.s32.totalorder %s156, %s157
    %p169 = scmp.eq.s32.totalorder %s21, 1
    %p170 = por %p168, %p169
    %p172 = scmp.ne.s32.totalorder %s157, %s171
    %p173 = scmp.eq.s32.totalorder %s21, 0
    %p174 = por %p172, %p173
    %s176 = sadd.s32 %s175, 1
    %p179 = scmp.eq.s32.totalorder %s15, 1
    %p180 = scmp.ne.s32.totalorder %s175, %s177
    %p181 = scmp.eq.s32.totalorder %s15, 0
    %p182 = por %p180, %p181
    %p183 = scmp.ne.s32.totalorder %s175, %s177
    %p184 = scmp.eq.s32.totalorder %s20, 1
    %p185 = por %p183, %p184
    %p186 = scmp.ne.s32.totalorder %s177, %s178
    %p187 = scmp.eq.s32.totalorder %s20, 0
    %p188 = por %p186, %p187
    %p189 = scmp.ne.s32.totalorder %s177, %s178
    %p190 = scmp.eq.s32.totalorder %s21, 1
    %p191 = por %p189, %p190
    %p193 = scmp.ne.s32.totalorder %s178, %s192
    %p194 = scmp.eq.s32.totalorder %s21, 0
    %p195 = por %p193, %p194
    %s197 = sadd.s32 %s196, 1
    %p200 = scmp.eq.s32.totalorder %s15, 1
    %p201 = scmp.ne.s32.totalorder %s196, %s198
    %p202 = scmp.eq.s32.totalorder %s15, 0
    %p203 = por %p201, %p202
    %p204 = scmp.ne.s32.totalorder %s196, %s198
    %p205 = scmp.eq.s32.totalorder %s20, 1
    %p206 = por %p204, %p205
    %p207 = scmp.ne.s32.totalorder %s198, %s199
    %p208 = scmp.eq.s32.totalorder %s20, 0
    %p209 = por %p207, %p208
    %p210 = scmp.ne.s32.totalorder %s198, %s199
    %p211 = scmp.eq.s32.totalorder %s21, 1
    %p212 = por %p210, %p211
    %p214 = scmp.ne.s32.totalorder %s199, %s213
    %p215 = scmp.eq.s32.totalorder %s21, 0
    %p216 = por %p214, %p215
    %s217 = ssub.s32 %s15, %s22
    %p218 = scmp.eq.s32.totalorder %s217, 0
    %s220 = sadd.s32 %s219, 1
    %s221 = scalar_select %p218, %s219, %s220
    %p224 = pneg %p218
    %p225 = scmp.eq.s32.totalorder %s15, 1
    %p226 = por %p224, %p225
    %p227 = scmp.ne.s32.totalorder %s219, %s222
    %p228 = scmp.eq.s32.totalorder %s15, 0
    %p229 = por %p227, %p228
    %p230 = scmp.ne.s32.totalorder %s219, %s222
    %p231 = scmp.eq.s32.totalorder %s20, 1
    %p232 = por %p230, %p231
    %p233 = scmp.ne.s32.totalorder %s222, %s223
    %p234 = scmp.eq.s32.totalorder %s20, 0
    %p235 = por %p233, %p234
    %p236 = scmp.ne.s32.totalorder %s222, %s223
    %p237 = scmp.eq.s32.totalorder %s21, 1
    %p238 = por %p236, %p237
    %p240 = scmp.ne.s32.totalorder %s223, %s239
    %p241 = scmp.eq.s32.totalorder %s21, 0
    %p242 = por %p240, %p241
    %p243 = scmp.le.s32.totalorder 1, %s15
    %p244 = scmp.lt.s32.totalorder %s15, 3
    %p245 = pnand %p243, %p244
    %p246 = pneg %p245
    // Predicated region
    $region9: #{cnn_class_forward.1} parent=5 // pred_check
      _
    $region10: #{cnn_class_forward.1} parent=5 // pred_check_branch
      %248 = sbr.rel (%p245) target = $region12
    $region11: #{cnn_class_forward.1} parent=5 // pred_region
      %s249 = ssub.s32 %s15, 1
      // Predicated region
      $region13: #{cnn_class_forward.1} parent=11 // pred_check
        %p250 = pneg %p62
      $region14: #{cnn_class_forward.1} parent=11 // pred_check_branch
        %252 = sbr.rel (%p250) target = $region16
      $region15: #{cnn_class_forward.1} parent=11 // pred_region
        _
      $region16: #{cnn_class_forward.1} parent=11 // pred_fallthru
        _
      // Predicated region
      $region17: #{cnn_class_forward.1} parent=11 // pred_check
        %p253 = pneg %p83
      $region18: #{cnn_class_forward.1} parent=11 // pred_check_branch
        %255 = sbr.rel (%p253) target = $region20
      $region19: #{cnn_class_forward.1} parent=11 // pred_region
        _
      $region20: #{cnn_class_forward.1} parent=11 // pred_fallthru
        _
      // Predicated region
      $region21: #{cnn_class_forward.1} parent=11 // pred_check
        %p256 = pneg %p104
      $region22: #{cnn_class_forward.1} parent=11 // pred_check_branch
        %258 = sbr.rel (%p256) target = $region24
      $region23: #{cnn_class_forward.1} parent=11 // pred_region
        _
      $region24: #{cnn_class_forward.1} parent=11 // pred_fallthru
        _
      // Predicated region
      $region25: #{cnn_class_forward.1} parent=11 // pred_check
        %p259 = pneg %p125
      $region26: #{cnn_class_forward.1} parent=11 // pred_check_branch
        %261 = sbr.rel (%p259) target = $region28
      $region27: #{cnn_class_forward.1} parent=11 // pred_region
        _
      $region28: #{cnn_class_forward.1} parent=11 // pred_fallthru
        _
      // Predicated region
      $region29: #{cnn_class_forward.1} parent=11 // pred_check
        %p262 = pneg %p146
      $region30: #{cnn_class_forward.1} parent=11 // pred_check_branch
        %264 = sbr.rel (%p262) target = $region32
      $region31: #{cnn_class_forward.1} parent=11 // pred_region
        _
      $region32: #{cnn_class_forward.1} parent=11 // pred_fallthru
        _
      // Predicated region
      $region33: #{cnn_class_forward.1} parent=11 // pred_check
        %p265 = pneg %p167
      $region34: #{cnn_class_forward.1} parent=11 // pred_check_branch
        %267 = sbr.rel (%p265) target = $region36
      $region35: #{cnn_class_forward.1} parent=11 // pred_region
        _
      $region36: #{cnn_class_forward.1} parent=11 // pred_fallthru
        _
      // Predicated region
      $region37: #{cnn_class_forward.1} parent=11 // pred_check
        %p268 = pneg %p188
      $region38: #{cnn_class_forward.1} parent=11 // pred_check_branch
        %270 = sbr.rel (%p268) target = $region40
      $region39: #{cnn_class_forward.1} parent=11 // pred_region
        _
      $region40: #{cnn_class_forward.1} parent=11 // pred_fallthru
        _
      // Predicated region
      $region41: #{cnn_class_forward.1} parent=11 // pred_check
        %p271 = pneg %p209
      $region42: #{cnn_class_forward.1} parent=11 // pred_check_branch
        %273 = sbr.rel (%p271) target = $region44
      $region43: #{cnn_class_forward.1} parent=11 // pred_region
        _
      $region44: #{cnn_class_forward.1} parent=11 // pred_fallthru
        _
    $region12: #{cnn_class_forward.1} parent=5 // pred_fallthru
      _
    %p274 = scmp.lt.s32.totalorder %s15, 2
    // Predicated region
    $region45: #{cnn_class_forward.1} parent=5 // pred_check
      %p275 = pneg %p274
    $region46: #{cnn_class_forward.1} parent=5 // pred_check_branch
      %277 = sbr.rel (%p275) target = $region48
    $region47: #{cnn_class_forward.1} parent=5 // pred_region
      // Predicated region
      $region49: #{cnn_class_forward.1} parent=47 // pred_check
        %p278 = pneg %p35
      $region50: #{cnn_class_forward.1} parent=47 // pred_check_branch
        %280 = sbr.rel (%p278) target = $region52
      $region51: #{cnn_class_forward.1} parent=47 // pred_region
        %p281 = scmp.lt.s32.totalorder %s15, 1
        %s282 = scalar_select %p281, %s15, 1
        %s283 = smul.addr %s282, 3
        %s284 = smul.addr %s283, 8
        %s285 = scalar_lea.vmem %s0, %s284
      $region52: #{cnn_class_forward.1} parent=47 // pred_fallthru
        _
    $region48: #{cnn_class_forward.1} parent=5 // pred_fallthru
      _
    %p286 = scmp.le.s32.totalorder 1, %s15
    %p287 = scmp.lt.s32.totalorder %s15, 3
    %p288 = pnand %p286, %p287
    %p289 = pneg %p288
    // Predicated region
    $region53: #{cnn_class_forward.1} parent=5 // pred_check
      _
    $region54: #{cnn_class_forward.1} parent=5 // pred_check_branch
      %291 = sbr.rel (%p288) target = $region56
    $region55: #{cnn_class_forward.1} parent=5 // pred_region
      %s292 = ssub.s32 %s15, 1
      %p293 = scmp.lt.s32.totalorder %s20, 1
      %s294 = scalar_select %p293, %s20, 1
      %s295 = smul.addr %s294, 3
      %s296 = smul.addr %s295, 8
      %s297 = scalar_lea.vmem %s0, %s296
      %p298 = pneg %p41
      %p299 = pneg %p38
      %p300 = pneg %p62
      %p301 = pneg %p59
      %p302 = pneg %p83
      %p303 = pneg %p80
      %p304 = pneg %p104
      %p305 = pneg %p101
      %p306 = pneg %p125
      %p307 = pneg %p122
      %p308 = pneg %p146
      %p309 = pneg %p143
      %p310 = pneg %p167
      %p311 = pneg %p164
      %p312 = pneg %p188
      %p313 = pneg %p185
      %p314 = pneg %p209
      %p315 = pneg %p206
      %p316 = pneg %p235
      %p317 = pneg %p232
      %p318 = scmp.lt.s32.totalorder %s20, 1
      %s319 = scalar_select %p318, %s20, 1
      %s320 = smul.addr %s319, 4
      %s321 = scalar_lea.vmem %s9, %s320
      %p322 = scmp.lt.s32.totalorder %s20, 1
      %s323 = scalar_select %p322, %s20, 1
      %s324 = smul.addr %s323, 3
      %s325 = smul.addr %s324, 8
      %s326 = scalar_lea.vmem %s0, %s325
      %p327 = scmp.lt.s32.totalorder %s20, 1
      %s328 = scalar_select %p327, %s20, 1
      %s329 = smul.addr %s328, 4
      %s330 = scalar_lea.vmem %s9, %s329
      %v332 = vld [vmem:[%s326] sm:$0xff]
      %v333 = vld [vmem:[%s326 + $0x8] sm:$0xff]
      %v334 = vld [vmem:[%s326 + $0x10] sm:$0x3]
      %v335 = vpack.c.bf16 %v333, %v332
      %v336 = vld [vmem:[%s1] sm:$0xf]
      %v337 = vld [vmem:[%s1 + $0x4] sm:$0xf]
      %v338 = vpack.c.bf16 %v334, %v334
      %s339 = scalar_lea.vmem %s1, 8
      %v340 = vld [vmem:[%s339] sm:$0xf]
      %v341 = vld [vmem:[%s339 + $0x4] sm:$0xf]
      %vm342 = vsmask.f32 7424
      %v344 = vshrl.u32 %v335, 16
      %v346 = vshll.u32 %v335, 16
      %v348 = vrot.slane %v346, 1
      %v349 = vor.u32 %v344, %v348
      %v351 = vshll.u32 %v338, 16
      %v353 = vrot.slane %v351, 1
      %v354 = vsel %vm342, %v349, %v353
      %v357 = vunpack.c.l.b16 %v340
      %v358 = vunpack.c.l.b16 %v341
      %v359 = vpack.c.b16 %v358, %v357
      %vm361 = vcmask 130048
      %v363 = vsel %vm361, %v354, 0
      %365 = vmatprep.subr.bf16.mxu0 0
      %366 = vmatpush1.bf16.msra.mxu0 %v359
      %367 = vmatprep.subr.bf16.mxu0 0
      %368 = vmatpush1.bf16.msra.mxu0 0
      %369 = vmatprep.subr.bf16.mxu0 0
      %370 = vmatpush1.bf16.msra.mxu0 0
      %371 = vmatprep.subr.bf16.mxu0 0
      %372 = vmatpush1.bf16.msra.mxu0 0
      %373 = vmatprep.subr.bf16.mxu0 0
      %374 = vmatpush1.bf16.msra.mxu0 0
      %375 = vmatprep.subr.bf16.mxu0 0
      %376 = vmatpush1.bf16.msra.mxu0 0
      %377 = vmatprep.subr.bf16.mxu0 0
      %378 = vmatpush1.bf16.msra.mxu0 0
      %379 = vmatprep.subr.bf16.mxu0 0
      %380 = vmatpush1.bf16.msra.mxu0 0
      %381 = vmatprep.subr.bf16.mxu0 0
      %382 = vmatpush1.bf16.msra.mxu0 0
      %383 = vmatprep.subr.bf16.mxu0 0
      %384 = vmatpush1.bf16.msra.mxu0 0
      %385 = vmatprep.subr.bf16.mxu0 0
      %386 = vmatpush1.bf16.msra.mxu0 0
      %387 = vmatprep.subr.bf16.mxu0 0
      %388 = vmatpush1.bf16.msra.mxu0 0
      %389 = vmatprep.subr.bf16.mxu0 0
      %390 = vmatpush1.bf16.msra.mxu0 0
      %391 = vmatprep.subr.bf16.mxu0 0
      %392 = vmatpush1.bf16.msra.mxu0 0
      %393 = vmatprep.subr.bf16.mxu0 0
      %394 = vmatpush1.bf16.msra.mxu0 0
      %395 = vmatprep.subr.bf16.mxu0 0
      %396 = vmatpush1.bf16.msra.mxu0 0
      %397 = vmatprep.mubr.bf16.mxu0 0
      %398 = vmatmul.mubr.bf16.gmra.mrb[0].mxu0 %v363
      %v399 = vpop.f32.mrb[0].mxu0
      %v400 = vadd.f32 0.0, %v399
      %v401 = vpop.f32.mrb[0].mxu0
      %v402 = vpop.f32.mrb[0].mxu0
      %v403 = vadd.f32 0.0, %v402
      %v404 = vpop.f32.mrb[0].mxu0
      %405 = vdwg.mxu0
      %v408 = vunpack.c.l.b16 %v336
      %v409 = vunpack.c.l.b16 %v337
      %v410 = vpack.c.b16 %v409, %v408
      %v412 = vsel %vm361, %v335, 0
      %414 = vmatprep.subr.bf16.mxu0 0
      %415 = vmatpush1.bf16.msra.mxu0 %v410
      %416 = vmatprep.subr.bf16.mxu0 0
      %417 = vmatpush1.bf16.msra.mxu0 0
      %418 = vmatprep.subr.bf16.mxu0 0
      %419 = vmatpush1.bf16.msra.mxu0 0
      %420 = vmatprep.subr.bf16.mxu0 0
      %421 = vmatpush1.bf16.msra.mxu0 0
      %422 = vmatprep.subr.bf16.mxu0 0
      %423 = vmatpush1.bf16.msra.mxu0 0
      %424 = vmatprep.subr.bf16.mxu0 0
      %425 = vmatpush1.bf16.msra.mxu0 0
      %426 = vmatprep.subr.bf16.mxu0 0
      %427 = vmatpush1.bf16.msra.mxu0 0
      %428 = vmatprep.subr.bf16.mxu0 0
      %429 = vmatpush1.bf16.msra.mxu0 0
      %430 = vmatprep.subr.bf16.mxu0 0
      %431 = vmatpush1.bf16.msra.mxu0 0
      %432 = vmatprep.subr.bf16.mxu0 0
      %433 = vmatpush1.bf16.msra.mxu0 0
      %434 = vmatprep.subr.bf16.mxu0 0
      %435 = vmatpush1.bf16.msra.mxu0 0
      %436 = vmatprep.subr.bf16.mxu0 0
      %437 = vmatpush1.bf16.msra.mxu0 0
      %438 = vmatprep.subr.bf16.mxu0 0
      %439 = vmatpush1.bf16.msra.mxu0 0
      %440 = vmatprep.subr.bf16.mxu0 0
      %441 = vmatpush1.bf16.msra.mxu0 0
      %442 = vmatprep.subr.bf16.mxu0 0
      %443 = vmatpush1.bf16.msra.mxu0 0
      %444 = vmatprep.subr.bf16.mxu0 0
      %445 = vmatpush1.bf16.msra.mxu0 0
      %446 = vmatprep.mubr.bf16.mxu0 0
      %447 = vmatmul.mubr.bf16.gmra.mrb[0].mxu0 %v412
      %v448 = vpop.f32.mrb[0].mxu0
      %v449 = vadd.f32 %v400, %v448
      %v450 = vpop.f32.mrb[0].mxu0
      %v451 = vpop.f32.mrb[0].mxu0
      %v452 = vadd.f32 %v403, %v451
      %v453 = vpop.f32.mrb[0].mxu0
      %454 = vdwg.mxu0
      %s455 = scalar_lea.vmem %s1, 16
      %v456 = vld [vmem:[%s455] sm:$0xf]
      %v457 = vld [vmem:[%s455 + $0x4] sm:$0xf]
      %vm460 = vcmask 1046528
      %v461 = vrot.slane %v335, 1
      %v462 = vrot.slane %v338, 1
      %v463 = vsel %vm460, %v461, %v462
      %v466 = vunpack.c.l.b16 %v456
      %v467 = vunpack.c.l.b16 %v457
      %v468 = vpack.c.b16 %v467, %v466
      %v471 = vsel %vm361, %v463, 0
      %473 = vmatprep.subr.bf16.mxu0 0
      %474 = vmatpush1.bf16.msra.mxu0 %v468
      %475 = vmatprep.subr.bf16.mxu0 0
      %476 = vmatpush1.bf16.msra.mxu0 0
      %477 = vmatprep.subr.bf16.mxu0 0
      %478 = vmatpush1.bf16.msra.mxu0 0
      %479 = vmatprep.subr.bf16.mxu0 0
      %480 = vmatpush1.bf16.msra.mxu0 0
      %481 = vmatprep.subr.bf16.mxu0 0
      %482 = vmatpush1.bf16.msra.mxu0 0
      %483 = vmatprep.subr.bf16.mxu0 0
      %484 = vmatpush1.bf16.msra.mxu0 0
      %485 = vmatprep.subr.bf16.mxu0 0
      %486 = vmatpush1.bf16.msra.mxu0 0
      %487 = vmatprep.subr.bf16.mxu0 0
      %488 = vmatpush1.bf16.msra.mxu0 0
      %489 = vmatprep.subr.bf16.mxu0 0
      %490 = vmatpush1.bf16.msra.mxu0 0
      %491 = vmatprep.subr.bf16.mxu0 0
      %492 = vmatpush1.bf16.msra.mxu0 0
      %493 = vmatprep.subr.bf16.mxu0 0
      %494 = vmatpush1.bf16.msra.mxu0 0
      %495 = vmatprep.subr.bf16.mxu0 0
      %496 = vmatpush1.bf16.msra.mxu0 0
      %497 = vmatprep.subr.bf16.mxu0 0
      %498 = vmatpush1.bf16.msra.mxu0 0
      %499 = vmatprep.subr.bf16.mxu0 0
      %500 = vmatpush1.bf16.msra.mxu0 0
      %501 = vmatprep.subr.bf16.mxu0 0
      %502 = vmatpush1.bf16.msra.mxu0 0
      %503 = vmatprep.subr.bf16.mxu0 0
      %504 = vmatpush1.bf16.msra.mxu0 0
      %505 = vmatprep.mubr.bf16.mxu0 0
      %506 = vmatmul.mubr.bf16.gmra.mrb[0].mxu0 %v471
      %v507 = vpop.f32.mrb[0].mxu0
      %v508 = vadd.f32 0.0, %v507
      %v509 = vpop.f32.mrb[0].mxu0
      %v510 = vpop.f32.mrb[0].mxu0
      %v511 = vadd.f32 0.0, %v510
      %v512 = vpop.f32.mrb[0].mxu0
      %513 = vdwg.mxu0
      %v514 = vadd.f32 %v449, %v508
      %v515 = vadd.f32 %v452, %v511
      %v516 = vld [vmem:[%s2] sm:$0x1]
      %v518 = vlaneseq
      %v519 = vshrl.u32 %v518, 7
      %v520 = vsub.s32 0, %v519
      %v521 = vrot.slane %v516, %v520
      %v523 = vadd.f32 %v514, %v521
      %v524 = vadd.f32 %v515, %v521
      %v526 = vrot.slane %v523, 1
      %v528 = vmax.f32 %v523, %v526
      %v530 = vrot.slane %v524, 1
      %v532 = vmax.f32 %v524, %v530
      %v534 = vrot.slane %v528, 1
      %v536 = vrot.slane %v528, 2
      %v538 = vrot.slane %v528, 3
      %v541 = vrot.slane %v532, 4
      %v543 = vrot.slane %v532, 5
      %v545 = vrot.slane %v532, 6
      %v547 = vrot.slane %v532, 7
      %vm549 = vcmask 1040384
      %v550 = vsel %vm549, %v528, %v534
      %vm551 = vcmask 1041408
      %v552 = vsel %vm551, %v550, %v536
      %vm553 = vcmask 1042432
      %v554 = vsel %vm553, %v552, %v538
      %vm555 = vcmask 1043456
      %v556 = vsel %vm555, %v554, %v541
      %vm557 = vcmask 1044480
      %v558 = vsel %vm557, %v556, %v543
      %vm559 = vcmask 1045504
      %v560 = vsel %vm559, %v558, %v545
      %vm561 = vcmask 1046528
      %v562 = vsel %vm561, %v560, %v547
      %564 = vrot.lane.b32.xlu0 %v562, 120
      %v565 = vpop.permute.xlu0 %564
      %v567 = vmax.f32 %v562, %v565
      %569 = vrot.lane.b32.xlu0 %v567, 120
      %v570 = vpop.permute.xlu0 %569
      %572 = vrot.lane.b32.xlu0 %v567, 112
      %v573 = vpop.permute.xlu0 %572
      %575 = vrot.lane.b32.xlu0 %v567, 104
      %v576 = vpop.permute.xlu0 %575
      %578 = vrot.lane.b32.xlu0 %v567, 96
      %v579 = vpop.permute.xlu0 %578
      %581 = vrot.lane.b32.xlu0 %v567, 88
      %v582 = vpop.permute.xlu0 %581
      %584 = vrot.lane.b32.xlu0 %v567, 80
      %v585 = vpop.permute.xlu0 %584
      %587 = vrot.lane.b32.xlu0 %v567, 72
      %v588 = vpop.permute.xlu0 %587
      %vm590 = vcmask 64512
      %v591 = vsel %vm590, %v567, %v570
      %v592 = vsel %vm361, %v591, %v573
      %vm593 = vcmask 195584
      %v594 = vsel %vm593, %v592, %v576
      %vm595 = vcmask 261120
      %v596 = vsel %vm595, %v594, %v579
      %vm597 = vcmask 326656
      %v598 = vsel %vm597, %v596, %v582
      %vm599 = vcmask 392192
      %v600 = vsel %vm599, %v598, %v585
      %vm601 = vcmask 457728
      %v602 = vsel %vm601, %v600, %v588
      %v603 = vmax.f32 %v602, 0.0
      %v605 = vrot.slane %v603, 7
      %v607 = vsel %vm549, 0.0, %v605
      %v608 = vsel %vm549, %v605, 0.0
      %v609 = vpack.c.bf16 %v607, %v607
      %v610 = vld [vmem:[%s3] sm:$0xf]
      %v611 = vld [vmem:[%s3 + $0x4] sm:$0xf]
      %v612 = vld [vmem:[%s3 + $0x8] sm:$0xf]
      %v613 = vld [vmem:[%s3 + $0xc] sm:$0xf]
      %v614 = vld [vmem:[%s3 + $0x10] sm:$0xf]
      %v615 = vld [vmem:[%s3 + $0x14] sm:$0xf]
      %v616 = vld [vmem:[%s3 + $0x18] sm:$0xf]
      %v617 = vld [vmem:[%s3 + $0x1c] sm:$0xf]
      %v618 = vpack.c.bf16 %v608, %v607
      %s619 = scalar_lea.vmem %s3, 32
      %v620 = vld [vmem:[%s619] sm:$0xf]
      %v621 = vld [vmem:[%s619 + $0x4] sm:$0xf]
      %v622 = vld [vmem:[%s619 + $0x8] sm:$0xf]
      %v623 = vld [vmem:[%s619 + $0xc] sm:$0xf]
      %v624 = vld [vmem:[%s619 + $0x10] sm:$0xf]
      %v625 = vld [vmem:[%s619 + $0x14] sm:$0xf]
      %v626 = vld [vmem:[%s619 + $0x18] sm:$0xf]
      %v627 = vld [vmem:[%s619 + $0x1c] sm:$0xf]
      %v629 = vshrl.u32 %v618, 16
      %v631 = vshll.u32 %v618, 16
      %v633 = vrot.slane %v631, 1
      %v634 = vor.u32 %v629, %v633
      %v643 = vunpack.c.l.b16 %v620
      %v644 = vunpack.c.l.b16 %v621
      %v645 = vunpack.c.l.b16 %v622
      %v646 = vunpack.c.l.b16 %v623
      %v647 = vunpack.c.l.b16 %v624
      %v648 = vunpack.c.l.b16 %v625
      %v649 = vunpack.c.l.b16 %v626
      %v650 = vunpack.c.l.b16 %v627
      %v651 = vpack.c.b16 %v644, %v643
      %v652 = vpack.c.b16 %v646, %v645
      %v653 = vpack.c.b16 %v648, %v647
      %v654 = vpack.c.b16 %v650, %v649
      %vm659 = vcmask 523264
      %v661 = vsel %vm659, %v634, 0
      %663 = vmatprep.subr.bf16.mxu0 0
      %664 = vmatpush1.bf16.msra.mxu0 %v651
      %665 = vmatprep.subr.bf16.mxu0 0
      %666 = vmatpush1.bf16.msra.mxu0 %v652
      %667 = vmatprep.subr.bf16.mxu0 0
      %668 = vmatpush1.bf16.msra.mxu0 %v653
      %669 = vmatprep.subr.bf16.mxu0 0
      %670 = vmatpush1.bf16.msra.mxu0 %v654
      %671 = vmatprep.subr.bf16.mxu0 0
      %672 = vmatpush1.bf16.msra.mxu0 0
      %673 = vmatprep.subr.bf16.mxu0 0
      %674 = vmatpush1.bf16.msra.mxu0 0
      %675 = vmatprep.subr.bf16.mxu0 0
      %676 = vmatpush1.bf16.msra.mxu0 0
      %677 = vmatprep.subr.bf16.mxu0 0
      %678 = vmatpush1.bf16.msra.mxu0 0
      %679 = vmatprep.subr.bf16.mxu0 0
      %680 = vmatpush1.bf16.msra.mxu0 0
      %681 = vmatprep.subr.bf16.mxu0 0
      %682 = vmatpush1.bf16.msra.mxu0 0
      %683 = vmatprep.subr.bf16.mxu0 0
      %684 = vmatpush1.bf16.msra.mxu0 0
      %685 = vmatprep.subr.bf16.mxu0 0
      %686 = vmatpush1.bf16.msra.mxu0 0
      %687 = vmatprep.subr.bf16.mxu0 0
      %688 = vmatpush1.bf16.msra.mxu0 0
      %689 = vmatprep.subr.bf16.mxu0 0
      %690 = vmatpush1.bf16.msra.mxu0 0
      %691 = vmatprep.subr.bf16.mxu0 0
      %692 = vmatpush1.bf16.msra.mxu0 0
      %693 = vmatprep.subr.bf16.mxu0 0
      %694 = vmatpush1.bf16.msra.mxu0 0
      %695 = vmatprep.mubr.bf16.mxu0 0
      %696 = vmatmul.mubr.bf16.gmra.mrb[0].mxu0 %v661
      %v697 = vpop.f32.mrb[0].mxu0
      %v698 = vadd.f32 0.0, %v697
      %v699 = vpop.f32.mrb[0].mxu0
      %v700 = vpop.f32.mrb[0].mxu0
      %v701 = vpop.f32.mrb[0].mxu0
      %702 = vdwg.mxu0
      %v711 = vunpack.c.l.b16 %v610
      %v712 = vunpack.c.l.b16 %v611
      %v713 = vunpack.c.l.b16 %v612
      %v714 = vunpack.c.l.b16 %v613
      %v715 = vunpack.c.l.b16 %v614
      %v716 = vunpack.c.l.b16 %v615
      %v717 = vunpack.c.l.b16 %v616
      %v718 = vunpack.c.l.b16 %v617
      %v719 = vpack.c.b16 %v712, %v711
      %v720 = vpack.c.b16 %v714, %v713
      %v721 = vpack.c.b16 %v716, %v715
      %v722 = vpack.c.b16 %v718, %v717
      %v728 = vsel %vm659, %v609, 0
      %730 = vmatprep.subr.bf16.mxu0 0
      %731 = vmatpush1.bf16.msra.mxu0 %v719
      %732 = vmatprep.subr.bf16.mxu0 0
      %733 = vmatpush1.bf16.msra.mxu0 %v720
      %734 = vmatprep.subr.bf16.mxu0 0
      %735 = vmatpush1.bf16.msra.mxu0 %v721
      %736 = vmatprep.subr.bf16.mxu0 0
      %737 = vmatpush1.bf16.msra.mxu0 %v722
      %738 = vmatprep.subr.bf16.mxu0 0
      %739 = vmatpush1.bf16.msra.mxu0 0
      %740 = vmatprep.subr.bf16.mxu0 0
      %741 = vmatpush1.bf16.msra.mxu0 0
      %742 = vmatprep.subr.bf16.mxu0 0
      %743 = vmatpush1.bf16.msra.mxu0 0
      %744 = vmatprep.subr.bf16.mxu0 0
      %745 = vmatpush1.bf16.msra.mxu0 0
      %746 = vmatprep.subr.bf16.mxu0 0
      %747 = vmatpush1.bf16.msra.mxu0 0
      %748 = vmatprep.subr.bf16.mxu0 0
      %749 = vmatpush1.bf16.msra.mxu0 0
      %750 = vmatprep.subr.bf16.mxu0 0
      %751 = vmatpush1.bf16.msra.mxu0 0
      %752 = vmatprep.subr.bf16.mxu0 0
      %753 = vmatpush1.bf16.msra.mxu0 0
      %754 = vmatprep.subr.bf16.mxu0 0
      %755 = vmatpush1.bf16.msra.mxu0 0
      %756 = vmatprep.subr.bf16.mxu0 0
      %757 = vmatpush1.bf16.msra.mxu0 0
      %758 = vmatprep.subr.bf16.mxu0 0
      %759 = vmatpush1.bf16.msra.mxu0 0
      %760 = vmatprep.subr.bf16.mxu0 0
      %761 = vmatpush1.bf16.msra.mxu0 0
      %762 = vmatprep.mubr.bf16.mxu0 0
      %763 = vmatmul.mubr.bf16.gmra.mrb[0].mxu0 %v728
      %v764 = vpop.f32.mrb[0].mxu0
      %v765 = vadd.f32 %v698, %v764
      %v766 = vpop.f32.mrb[0].mxu0
      %v767 = vpop.f32.mrb[0].mxu0
      %v768 = vpop.f32.mrb[0].mxu0
      %769 = vdwg.mxu0
      %s770 = scalar_lea.vmem %s3, 64
      %v771 = vld [vmem:[%s770] sm:$0xf]
      %v772 = vld [vmem:[%s770 + $0x4] sm:$0xf]
      %v773 = vld [vmem:[%s770 + $0x8] sm:$0xf]
      %v774 = vld [vmem:[%s770 + $0xc] sm:$0xf]
      %v775 = vld [vmem:[%s770 + $0x10] sm:$0xf]
      %v776 = vld [vmem:[%s770 + $0x14] sm:$0xf]
      %v777 = vld [vmem:[%s770 + $0x18] sm:$0xf]
      %v778 = vld [vmem:[%s770 + $0x1c] sm:$0xf]
      %v780 = vrot.slane %v618, 1
      %v789 = vunpack.c.l.b16 %v771
      %v790 = vunpack.c.l.b16 %v772
      %v791 = vunpack.c.l.b16 %v773
      %v792 = vunpack.c.l.b16 %v774
      %v793 = vunpack.c.l.b16 %v775
      %v794 = vunpack.c.l.b16 %v776
      %v795 = vunpack.c.l.b16 %v777
      %v796 = vunpack.c.l.b16 %v778
      %v797 = vpack.c.b16 %v790, %v789
      %v798 = vpack.c.b16 %v792, %v791
      %v799 = vpack.c.b16 %v794, %v793
      %v800 = vpack.c.b16 %v796, %v795
      %v806 = vsel %vm659, %v780, 0
      %808 = vmatprep.subr.bf16.mxu0 0
      %809 = vmatpush1.bf16.msra.mxu0 %v797
      %810 = vmatprep.subr.bf16.mxu0 0
      %811 = vmatpush1.bf16.msra.mxu0 %v798
      %812 = vmatprep.subr.bf16.mxu0 0
      %813 = vmatpush1.bf16.msra.mxu0 %v799
      %814 = vmatprep.subr.bf16.mxu0 0
      %815 = vmatpush1.bf16.msra.mxu0 %v800
      %816 = vmatprep.subr.bf16.mxu0 0
      %817 = vmatpush1.bf16.msra.mxu0 0
      %818 = vmatprep.subr.bf16.mxu0 0
      %819 = vmatpush1.bf16.msra.mxu0 0
      %820 = vmatprep.subr.bf16.mxu0 0
      %821 = vmatpush1.bf16.msra.mxu0 0
      %822 = vmatprep.subr.bf16.mxu0 0
      %823 = vmatpush1.bf16.msra.mxu0 0
      %824 = vmatprep.subr.bf16.mxu0 0
      %825 = vmatpush1.bf16.msra.mxu0 0
      %826 = vmatprep.subr.bf16.mxu0 0
      %827 = vmatpush1.bf16.msra.mxu0 0
      %828 = vmatprep.subr.bf16.mxu0 0
      %829 = vmatpush1.bf16.msra.mxu0 0
      %830 = vmatprep.subr.bf16.mxu0 0
      %831 = vmatpush1.bf16.msra.mxu0 0
      %832 = vmatprep.subr.bf16.mxu0 0
      %833 = vmatpush1.bf16.msra.mxu0 0
      %834 = vmatprep.subr.bf16.mxu0 0
      %835 = vmatpush1.bf16.msra.mxu0 0
      %836 = vmatprep.subr.bf16.mxu0 0
      %837 = vmatpush1.bf16.msra.mxu0 0
      %838 = vmatprep.subr.bf16.mxu0 0
      %839 = vmatpush1.bf16.msra.mxu0 0
      %840 = vmatprep.mubr.bf16.mxu0 0
      %841 = vmatmul.mubr.bf16.gmra.mrb[0].mxu0 %v806
      %v842 = vpop.f32.mrb[0].mxu0
      %v843 = vadd.f32 0.0, %v842
      %v844 = vpop.f32.mrb[0].mxu0
      %v845 = vpop.f32.mrb[0].mxu0
      %v846 = vpop.f32.mrb[0].mxu0
      %847 = vdwg.mxu0
      %v848 = vadd.f32 %v765, %v843
      %v849 = vld [vmem:[%s4] sm:$0x1]
      %v851 = vlaneseq
      %v852 = vshrl.u32 %v851, 7
      %v853 = vsub.s32 0, %v852
      %v854 = vrot.slane %v849, %v853
      %v856 = vadd.f32 %v848, %v854
      %v858 = vrot.slane %v856, 1
      %v860 = vmax.f32 %v856, %v858
      %v862 = vrot.slane %v860, 1
      %v864 = vrot.slane %v860, 2
      %v866 = vrot.slane %v860, 3
      %v868 = vsel %vm549, %v860, %v862
      %v869 = vsel %vm551, %v868, %v864
      %v870 = vsel %vm553, %v869, %v866
      %872 = vrot.lane.b32.xlu0 %v870, 112
      %v873 = vpop.permute.xlu0 %872
      %v875 = vmax.f32 %v870, %v873
      %877 = vrot.lane.b32.xlu0 %v875, 112
      %v878 = vpop.permute.xlu0 %877
      %880 = vrot.lane.b32.xlu0 %v875, 96
      %v881 = vpop.permute.xlu0 %880
      %883 = vrot.lane.b32.xlu0 %v875, 80
      %v884 = vpop.permute.xlu0 %883
      %v886 = vsel %vm361, %v875, %v878
      %v887 = vsel %vm595, %v886, %v881
      %v888 = vsel %vm599, %v887, %v884
      %v889 = vmax.f32 %v888, 0.0
      %v891 = vrot.slane %v889, 7
      %v893 = vsel %vm549, 0.0, %v891
      %v894 = vsel %vm557, %v893, 0.0
      %v895 = vpack.c.bf16 %v894, %v894
      %v896 = vld [vmem:[%s5] sm:$0xf]
      %v897 = vld [vmem:[%s5 + $0x4] sm:$0xf]
      %v898 = vld [vmem:[%s5 + $0x8] sm:$0xf]
      %v899 = vld [vmem:[%s5 + $0xc] sm:$0xf]
      %v900 = vld [vmem:[%s5 + $0x10] sm:$0xf]
      %v901 = vld [vmem:[%s5 + $0x14] sm:$0xf]
      %v902 = vld [vmem:[%s5 + $0x18] sm:$0xf]
      %v903 = vld [vmem:[%s5 + $0x1c] sm:$0xf]
      %s904 = scalar_lea.vmem %s5, 32
      %v905 = vld [vmem:[%s904] sm:$0xf]
      %v906 = vld [vmem:[%s904 + $0x4] sm:$0xf]
      %v907 = vld [vmem:[%s904 + $0x8] sm:$0xf]
      %v908 = vld [vmem:[%s904 + $0xc] sm:$0xf]
      %v909 = vld [vmem:[%s904 + $0x10] sm:$0xf]
      %v910 = vld [vmem:[%s904 + $0x14] sm:$0xf]
      %v911 = vld [vmem:[%s904 + $0x18] sm:$0xf]
      %v912 = vld [vmem:[%s904 + $0x1c] sm:$0xf]
      %v914 = vshrl.u32 %v895, 16
      %v916 = vshll.u32 %v895, 16
      %v918 = vrot.slane %v916, 1
      %v919 = vor.u32 %v914, %v918
      %v928 = vunpack.c.l.b16 %v905
      %v929 = vunpack.c.l.b16 %v906
      %v930 = vunpack.c.l.b16 %v907
      %v931 = vunpack.c.l.b16 %v908
      %v932 = vunpack.c.l.b16 %v909
      %v933 = vunpack.c.l.b16 %v910
      %v934 = vunpack.c.l.b16 %v911
      %v935 = vunpack.c.l.b16 %v912
      %v936 = vpack.c.b16 %v929, %v928
      %v937 = vpack.c.b16 %v931, %v930
      %v938 = vpack.c.b16 %v933, %v932
      %v939 = vpack.c.b16 %v935, %v934
      %v945 = vsel %vm659, %v919, 0
      %947 = vmatprep.subr.bf16.mxu0 0
      %948 = vmatpush1.bf16.msra.mxu0 %v936
      %949 = vmatprep.subr.bf16.mxu0 0
      %950 = vmatpush1.bf16.msra.mxu0 %v937
      %951 = vmatprep.subr.bf16.mxu0 0
      %952 = vmatpush1.bf16.msra.mxu0 %v938
      %953 = vmatprep.subr.bf16.mxu0 0
      %954 = vmatpush1.bf16.msra.mxu0 %v939
      %955 = vmatprep.subr.bf16.mxu0 0
      %956 = vmatpush1.bf16.msra.mxu0 0
      %957 = vmatprep.subr.bf16.mxu0 0
      %958 = vmatpush1.bf16.msra.mxu0 0
      %959 = vmatprep.subr.bf16.mxu0 0
      %960 = vmatpush1.bf16.msra.mxu0 0
      %961 = vmatprep.subr.bf16.mxu0 0
      %962 = vmatpush1.bf16.msra.mxu0 0
      %963 = vmatprep.subr.bf16.mxu0 0
      %964 = vmatpush1.bf16.msra.mxu0 0
      %965 = vmatprep.subr.bf16.mxu0 0
      %966 = vmatpush1.bf16.msra.mxu0 0
      %967 = vmatprep.subr.bf16.mxu0 0
      %968 = vmatpush1.bf16.msra.mxu0 0
      %969 = vmatprep.subr.bf16.mxu0 0
      %970 = vmatpush1.bf16.msra.mxu0 0
      %971 = vmatprep.subr.bf16.mxu0 0
      %972 = vmatpush1.bf16.msra.mxu0 0
      %973 = vmatprep.subr.bf16.mxu0 0
      %974 = vmatpush1.bf16.msra.mxu0 0
      %975 = vmatprep.subr.bf16.mxu0 0
      %976 = vmatpush1.bf16.msra.mxu0 0
      %977 = vmatprep.subr.bf16.mxu0 0
      %978 = vmatpush1.bf16.msra.mxu0 0
      %979 = vmatprep.mubr.bf16.mxu0 0
      %980 = vmatmul.mubr.bf16.gmra.mrb[0].mxu0 %v945
      %v981 = vpop.f32.mrb[0].mxu0
      %v982 = vadd.f32 0.0, %v981
      %v983 = vpop.f32.mrb[0].mxu0
      %v984 = vpop.f32.mrb[0].mxu0
      %v985 = vpop.f32.mrb[0].mxu0
      %986 = vdwg.mxu0
      %v995 = vunpack.c.l.b16 %v896
      %v996 = vunpack.c.l.b16 %v897
      %v997 = vunpack.c.l.b16 %v898
      %v998 = vunpack.c.l.b16 %v899
      %v999 = vunpack.c.l.b16 %v900
      %v1000 = vunpack.c.l.b16 %v901
      %v1001 = vunpack.c.l.b16 %v902
      %v1002 = vunpack.c.l.b16 %v903
      %v1003 = vpack.c.b16 %v996, %v995
      %v1004 = vpack.c.b16 %v998, %v997
      %v1005 = vpack.c.b16 %v1000, %v999
      %v1006 = vpack.c.b16 %v1002, %v1001
      %v1011 = vsel %vm659, %v895, 0
      %1013 = vmatprep.subr.bf16.mxu0 0
      %1014 = vmatpush1.bf16.msra.mxu0 %v1003
      %1015 = vmatprep.subr.bf16.mxu0 0
      %1016 = vmatpush1.bf16.msra.mxu0 %v1004
      %1017 = vmatprep.subr.bf16.mxu0 0
      %1018 = vmatpush1.bf16.msra.mxu0 %v1005
      %1019 = vmatprep.subr.bf16.mxu0 0
      %1020 = vmatpush1.bf16.msra.mxu0 %v1006
      %1021 = vmatprep.subr.bf16.mxu0 0
      %1022 = vmatpush1.bf16.msra.mxu0 0
      %1023 = vmatprep.subr.bf16.mxu0 0
      %1024 = vmatpush1.bf16.msra.mxu0 0
      %1025 = vmatprep.subr.bf16.mxu0 0
      %1026 = vmatpush1.bf16.msra.mxu0 0
      %1027 = vmatprep.subr.bf16.mxu0 0
      %1028 = vmatpush1.bf16.msra.mxu0 0
      %1029 = vmatprep.subr.bf16.mxu0 0
      %1030 = vmatpush1.bf16.msra.mxu0 0
      %1031 = vmatprep.subr.bf16.mxu0 0
      %1032 = vmatpush1.bf16.msra.mxu0 0
      %1033 = vmatprep.subr.bf16.mxu0 0
      %1034 = vmatpush1.bf16.msra.mxu0 0
      %1035 = vmatprep.subr.bf16.mxu0 0
      %1036 = vmatpush1.bf16.msra.mxu0 0
      %1037 = vmatprep.subr.bf16.mxu0 0
      %1038 = vmatpush1.bf16.msra.mxu0 0
      %1039 = vmatprep.subr.bf16.mxu0 0
      %1040 = vmatpush1.bf16.msra.mxu0 0
      %1041 = vmatprep.subr.bf16.mxu0 0
      %1042 = vmatpush1.bf16.msra.mxu0 0
      %1043 = vmatprep.subr.bf16.mxu0 0
      %1044 = vmatpush1.bf16.msra.mxu0 0
      %1045 = vmatprep.mubr.bf16.mxu0 0
      %1046 = vmatmul.mubr.bf16.gmra.mrb[0].mxu0 %v1011
      %v1047 = vpop.f32.mrb[0].mxu0
      %v1048 = vadd.f32 %v982, %v1047
      %v1049 = vpop.f32.mrb[0].mxu0
      %v1050 = vpop.f32.mrb[0].mxu0
      %v1051 = vpop.f32.mrb[0].mxu0
      %1052 = vdwg.mxu0
      %s1053 = scalar_lea.vmem %s5, 64
      %v1054 = vld [vmem:[%s1053] sm:$0xf]
      %v1055 = vld [vmem:[%s1053 + $0x4] sm:$0xf]
      %v1056 = vld [vmem:[%s1053 + $0x8] sm:$0xf]
      %v1057 = vld [vmem:[%s1053 + $0xc] sm:$0xf]
      %v1058 = vld [vmem:[%s1053 + $0x10] sm:$0xf]
      %v1059 = vld [vmem:[%s1053 + $0x14] sm:$0xf]
      %v1060 = vld [vmem:[%s1053 + $0x18] sm:$0xf]
      %v1061 = vld [vmem:[%s1053 + $0x1c] sm:$0xf]
      %v1063 = vrot.slane %v895, 1
      %v1072 = vunpack.c.l.b16 %v1054
      %v1073 = vunpack.c.l.b16 %v1055
      %v1074 = vunpack.c.l.b16 %v1056
      %v1075 = vunpack.c.l.b16 %v1057
      %v1076 = vunpack.c.l.b16 %v1058
      %v1077 = vunpack.c.l.b16 %v1059
      %v1078 = vunpack.c.l.b16 %v1060
      %v1079 = vunpack.c.l.b16 %v1061
      %v1080 = vpack.c.b16 %v1073, %v1072
      %v1081 = vpack.c.b16 %v1075, %v1074
      %v1082 = vpack.c.b16 %v1077, %v1076
      %v1083 = vpack.c.b16 %v1079, %v1078
      %v1089 = vsel %vm659, %v1063, 0
      %1091 = vmatprep.subr.bf16.mxu0 0
      %1092 = vmatpush1.bf16.msra.mxu0 %v1080
      %1093 = vmatprep.subr.bf16.mxu0 0
      %1094 = vmatpush1.bf16.msra.mxu0 %v1081
      %1095 = vmatprep.subr.bf16.mxu0 0
      %1096 = vmatpush1.bf16.msra.mxu0 %v1082
      %1097 = vmatprep.subr.bf16.mxu0 0
      %1098 = vmatpush1.bf16.msra.mxu0 %v1083
      %1099 = vmatprep.subr.bf16.mxu0 0
      %1100 = vmatpush1.bf16.msra.mxu0 0
      %1101 = vmatprep.subr.bf16.mxu0 0
      %1102 = vmatpush1.bf16.msra.mxu0 0
      %1103 = vmatprep.subr.bf16.mxu0 0
      %1104 = vmatpush1.bf16.msra.mxu0 0
      %1105 = vmatprep.subr.bf16.mxu0 0
      %1106 = vmatpush1.bf16.msra.mxu0 0
      %1107 = vmatprep.subr.bf16.mxu0 0
      %1108 = vmatpush1.bf16.msra.mxu0 0
      %1109 = vmatprep.subr.bf16.mxu0 0
      %1110 = vmatpush1.bf16.msra.mxu0 0
      %1111 = vmatprep.subr.bf16.mxu0 0
      %1112 = vmatpush1.bf16.msra.mxu0 0
      %1113 = vmatprep.subr.bf16.mxu0 0
      %1114 = vmatpush1.bf16.msra.mxu0 0
      %1115 = vmatprep.subr.bf16.mxu0 0
      %1116 = vmatpush1.bf16.msra.mxu0 0
      %1117 = vmatprep.subr.bf16.mxu0 0
      %1118 = vmatpush1.bf16.msra.mxu0 0
      %1119 = vmatprep.subr.bf16.mxu0 0
      %1120 = vmatpush1.bf16.msra.mxu0 0
      %1121 = vmatprep.subr.bf16.mxu0 0
      %1122 = vmatpush1.bf16.msra.mxu0 0
      %1123 = vmatprep.mubr.bf16.mxu0 0
      %1124 = vmatmul.mubr.bf16.gmra.mrb[0].mxu0 %v1089
      %v1125 = vpop.f32.mrb[0].mxu0
      %v1126 = vadd.f32 0.0, %v1125
      %v1127 = vpop.f32.mrb[0].mxu0
      %v1128 = vpop.f32.mrb[0].mxu0
      %v1129 = vpop.f32.mrb[0].mxu0
      %1130 = vdwg.mxu0
      %v1131 = vadd.f32 %v1048, %v1126
      %v1132 = vld [vmem:[%s6] sm:$0x1]
      %v1134 = vlaneseq
      %v1135 = vshrl.u32 %v1134, 7
      %v1136 = vsub.s32 0, %v1135
      %v1137 = vrot.slane %v1132, %v1136
      %v1139 = vadd.f32 %v1131, %v1137
      %v1140 = vmax.f32 %v1139, 0.0
      %v1142 = vrot.slane %v1140, 7
      %v1144 = vsel %vm549, 0.0, %v1142
      %v1145 = vsel %vm557, %v1144, 0.0
      %v1146 = vpack.c.bf16 %v1145, %v1145
      %v1147 = vld [vmem:[%s7] sm:$0xf]
      %v1148 = vld [vmem:[%s7 + $0x4] sm:$0xf]
      %v1149 = vld [vmem:[%s7 + $0x8] sm:$0xf]
      %v1150 = vld [vmem:[%s7 + $0xc] sm:$0xf]
      %v1151 = vld [vmem:[%s7 + $0x10] sm:$0xf]
      %v1152 = vld [vmem:[%s7 + $0x14] sm:$0xf]
      %v1153 = vld [vmem:[%s7 + $0x18] sm:$0xf]
      %v1154 = vld [vmem:[%s7 + $0x1c] sm:$0xf]
      %v1155 = vld [vmem:[%s7 + $0x20] sm:$0xf]
      %v1156 = vld [vmem:[%s7 + $0x24] sm:$0xf]
      %v1157 = vld [vmem:[%s7 + $0x28] sm:$0xf]
      %v1158 = vld [vmem:[%s7 + $0x2c] sm:$0xf]
      %v1159 = vld [vmem:[%s7 + $0x30] sm:$0xf]
      %v1160 = vld [vmem:[%s7 + $0x34] sm:$0xf]
      %v1161 = vld [vmem:[%s7 + $0x38] sm:$0xf]
      %v1162 = vld [vmem:[%s7 + $0x3c] sm:$0xf]
      %s1163 = scalar_lea.vmem %s7, 64
      %v1164 = vld [vmem:[%s1163] sm:$0xf]
      %v1165 = vld [vmem:[%s1163 + $0x4] sm:$0xf]
      %v1166 = vld [vmem:[%s1163 + $0x8] sm:$0xf]
      %v1167 = vld [vmem:[%s1163 + $0xc] sm:$0xf]
      %v1168 = vld [vmem:[%s1163 + $0x10] sm:$0xf]
      %v1169 = vld [vmem:[%s1163 + $0x14] sm:$0xf]
      %v1170 = vld [vmem:[%s1163 + $0x18] sm:$0xf]
      %v1171 = vld [vmem:[%s1163 + $0x1c] sm:$0xf]
      %v1172 = vld [vmem:[%s1163 + $0x20] sm:$0xf]
      %v1173 = vld [vmem:[%s1163 + $0x24] sm:$0xf]
      %v1174 = vld [vmem:[%s1163 + $0x28] sm:$0xf]
      %v1175 = vld [vmem:[%s1163 + $0x2c] sm:$0xf]
      %v1176 = vld [vmem:[%s1163 + $0x30] sm:$0xf]
      %v1177 = vld [vmem:[%s1163 + $0x34] sm:$0xf]
      %v1178 = vld [vmem:[%s1163 + $0x38] sm:$0xf]
      %v1179 = vld [vmem:[%s1163 + $0x3c] sm:$0xf]
      %v1181 = vshrl.u32 %v1146, 16
      %v1183 = vshll.u32 %v1146, 16
      %v1185 = vrot.slane %v1183, 1
      %v1186 = vor.u32 %v1181, %v1185
      %v1204 = vunpack.c.l.b16 %v1164
      %v1205 = vunpack.c.l.b16 %v1165
      %v1206 = vunpack.c.l.b16 %v1166
      %v1207 = vunpack.c.l.b16 %v1167
      %v1208 = vunpack.c.l.b16 %v1168
      %v1209 = vunpack.c.l.b16 %v1169
      %v1210 = vunpack.c.l.b16 %v1170
      %v1211 = vunpack.c.l.b16 %v1171
      %v1212 = vunpack.c.l.b16 %v1172
      %v1213 = vunpack.c.l.b16 %v1173
      %v1214 = vunpack.c.l.b16 %v1174
      %v1215 = vunpack.c.l.b16 %v1175
      %v1216 = vunpack.c.l.b16 %v1176
      %v1217 = vunpack.c.l.b16 %v1177
      %v1218 = vunpack.c.l.b16 %v1178
      %v1219 = vunpack.c.l.b16 %v1179
      %v1220 = vpack.c.b16 %v1205, %v1204
      %v1221 = vpack.c.b16 %v1207, %v1206
      %v1222 = vpack.c.b16 %v1209, %v1208
      %v1223 = vpack.c.b16 %v1211, %v1210
      %v1224 = vpack.c.b16 %v1213, %v1212
      %v1225 = vpack.c.b16 %v1215, %v1214
      %v1226 = vpack.c.b16 %v1217, %v1216
      %v1227 = vpack.c.b16 %v1219, %v1218
      %1236 = vmatprep.subr.bf16.mxu0 0
      %1237 = vmatpush1.bf16.msra.mxu0 %v1220
      %1238 = vmatprep.subr.bf16.mxu0 0
      %1239 = vmatpush1.bf16.msra.mxu0 %v1221
      %1240 = vmatprep.subr.bf16.mxu0 0
      %1241 = vmatpush1.bf16.msra.mxu0 %v1222
      %1242 = vmatprep.subr.bf16.mxu0 0
      %1243 = vmatpush1.bf16.msra.mxu0 %v1223
      %1244 = vmatprep.subr.bf16.mxu0 0
      %1245 = vmatpush1.bf16.msra.mxu0 %v1224
      %1246 = vmatprep.subr.bf16.mxu0 0
      %1247 = vmatpush1.bf16.msra.mxu0 %v1225
      %1248 = vmatprep.subr.bf16.mxu0 0
      %1249 = vmatpush1.bf16.msra.mxu0 %v1226
      %1250 = vmatprep.subr.bf16.mxu0 0
      %1251 = vmatpush1.bf16.msra.mxu0 %v1227
      %1252 = vmatprep.subr.bf16.mxu0 0
      %1253 = vmatpush1.bf16.msra.mxu0 0
      %1254 = vmatprep.subr.bf16.mxu0 0
      %1255 = vmatpush1.bf16.msra.mxu0 0
      %1256 = vmatprep.subr.bf16.mxu0 0
      %1257 = vmatpush1.bf16.msra.mxu0 0
      %1258 = vmatprep.subr.bf16.mxu0 0
      %1259 = vmatpush1.bf16.msra.mxu0 0
      %1260 = vmatprep.subr.bf16.mxu0 0
      %1261 = vmatpush1.bf16.msra.mxu0 0
      %1262 = vmatprep.subr.bf16.mxu0 0
      %1263 = vmatpush1.bf16.msra.mxu0 0
      %1264 = vmatprep.subr.bf16.mxu0 0
      %1265 = vmatpush1.bf16.msra.mxu0 0
      %1266 = vmatprep.subr.bf16.mxu0 0
      %1267 = vmatpush1.bf16.msra.mxu0 0
      %1268 = vmatprep.mubr.bf16.mxu0 0
      %1269 = vmatmul.mubr.bf16.gmra.mrb[0].mxu0 %v1186
      %v1270 = vpop.f32.mrb[0].mxu0
      %v1271 = vadd.f32 0.0, %v1270
      %v1272 = vpop.f32.mrb[0].mxu0
      %v1273 = vpop.f32.mrb[0].mxu0
      %v1274 = vpop.f32.mrb[0].mxu0
      %1275 = vdwg.mxu0
      %v1292 = vunpack.c.l.b16 %v1147
      %v1293 = vunpack.c.l.b16 %v1148
      %v1294 = vunpack.c.l.b16 %v1149
      %v1295 = vunpack.c.l.b16 %v1150
      %v1296 = vunpack.c.l.b16 %v1151
      %v1297 = vunpack.c.l.b16 %v1152
      %v1298 = vunpack.c.l.b16 %v1153
      %v1299 = vunpack.c.l.b16 %v1154
      %v1300 = vunpack.c.l.b16 %v1155
      %v1301 = vunpack.c.l.b16 %v1156
      %v1302 = vunpack.c.l.b16 %v1157
      %v1303 = vunpack.c.l.b16 %v1158
      %v1304 = vunpack.c.l.b16 %v1159
      %v1305 = vunpack.c.l.b16 %v1160
      %v1306 = vunpack.c.l.b16 %v1161
      %v1307 = vunpack.c.l.b16 %v1162
      %v1308 = vpack.c.b16 %v1293, %v1292
      %v1309 = vpack.c.b16 %v1295, %v1294
      %v1310 = vpack.c.b16 %v1297, %v1296
      %v1311 = vpack.c.b16 %v1299, %v1298
      %v1312 = vpack.c.b16 %v1301, %v1300
      %v1313 = vpack.c.b16 %v1303, %v1302
      %v1314 = vpack.c.b16 %v1305, %v1304
      %v1315 = vpack.c.b16 %v1307, %v1306
      %1324 = vmatprep.subr.bf16.mxu0 0
      %1325 = vmatpush1.bf16.msra.mxu0 %v1308
      %1326 = vmatprep.subr.bf16.mxu0 0
      %1327 = vmatpush1.bf16.msra.mxu0 %v1309
      %1328 = vmatprep.subr.bf16.mxu0 0
      %1329 = vmatpush1.bf16.msra.mxu0 %v1310
      %1330 = vmatprep.subr.bf16.mxu0 0
      %1331 = vmatpush1.bf16.msra.mxu0 %v1311
      %1332 = vmatprep.subr.bf16.mxu0 0
      %1333 = vmatpush1.bf16.msra.mxu0 %v1312
      %1334 = vmatprep.subr.bf16.mxu0 0
      %1335 = vmatpush1.bf16.msra.mxu0 %v1313
      %1336 = vmatprep.subr.bf16.mxu0 0
      %1337 = vmatpush1.bf16.msra.mxu0 %v1314
      %1338 = vmatprep.subr.bf16.mxu0 0
      %1339 = vmatpush1.bf16.msra.mxu0 %v1315
      %1340 = vmatprep.subr.bf16.mxu0 0
      %1341 = vmatpush1.bf16.msra.mxu0 0
      %1342 = vmatprep.subr.bf16.mxu0 0
      %1343 = vmatpush1.bf16.msra.mxu0 0
      %1344 = vmatprep.subr.bf16.mxu0 0
      %1345 = vmatpush1.bf16.msra.mxu0 0
      %1346 = vmatprep.subr.bf16.mxu0 0
      %1347 = vmatpush1.bf16.msra.mxu0 0
      %1348 = vmatprep.subr.bf16.mxu0 0
      %1349 = vmatpush1.bf16.msra.mxu0 0
      %1350 = vmatprep.subr.bf16.mxu0 0
      %1351 = vmatpush1.bf16.msra.mxu0 0
      %1352 = vmatprep.subr.bf16.mxu0 0
      %1353 = vmatpush1.bf16.msra.mxu0 0
      %1354 = vmatprep.subr.bf16.mxu0 0
      %1355 = vmatpush1.bf16.msra.mxu0 0
      %1356 = vmatprep.mubr.bf16.mxu0 0
      %1357 = vmatmul.mubr.bf16.gmra.mrb[0].mxu0 %v1146
      %v1358 = vpop.f32.mrb[0].mxu0
      %v1359 = vadd.f32 %v1271, %v1358
      %v1360 = vpop.f32.mrb[0].mxu0
      %v1361 = vpop.f32.mrb[0].mxu0
      %v1362 = vpop.f32.mrb[0].mxu0
      %1363 = vdwg.mxu0
      %s1364 = scalar_lea.vmem %s7, 128
      %v1365 = vld [vmem:[%s1364] sm:$0xf]
      %v1366 = vld [vmem:[%s1364 + $0x4] sm:$0xf]
      %v1367 = vld [vmem:[%s1364 + $0x8] sm:$0xf]
      %v1368 = vld [vmem:[%s1364 + $0xc] sm:$0xf]
      %v1369 = vld [vmem:[%s1364 + $0x10] sm:$0xf]
      %v1370 = vld [vmem:[%s1364 + $0x14] sm:$0xf]
      %v1371 = vld [vmem:[%s1364 + $0x18] sm:$0xf]
      %v1372 = vld [vmem:[%s1364 + $0x1c] sm:$0xf]
      %v1373 = vld [vmem:[%s1364 + $0x20] sm:$0xf]
      %v1374 = vld [vmem:[%s1364 + $0x24] sm:$0xf]
      %v1375 = vld [vmem:[%s1364 + $0x28] sm:$0xf]
      %v1376 = vld [vmem:[%s1364 + $0x2c] sm:$0xf]
      %v1377 = vld [vmem:[%s1364 + $0x30] sm:$0xf]
      %v1378 = vld [vmem:[%s1364 + $0x34] sm:$0xf]
      %v1379 = vld [vmem:[%s1364 + $0x38] sm:$0xf]
      %v1380 = vld [vmem:[%s1364 + $0x3c] sm:$0xf]
      %v1382 = vrot.slane %v1146, 1
      %v1400 = vunpack.c.l.b16 %v1365
      %v1401 = vunpack.c.l.b16 %v1366
      %v1402 = vunpack.c.l.b16 %v1367
      %v1403 = vunpack.c.l.b16 %v1368
      %v1404 = vunpack.c.l.b16 %v1369
      %v1405 = vunpack.c.l.b16 %v1370
      %v1406 = vunpack.c.l.b16 %v1371
      %v1407 = vunpack.c.l.b16 %v1372
      %v1408 = vunpack.c.l.b16 %v1373
      %v1409 = vunpack.c.l.b16 %v1374
      %v1410 = vunpack.c.l.b16 %v1375
      %v1411 = vunpack.c.l.b16 %v1376
      %v1412 = vunpack.c.l.b16 %v1377
      %v1413 = vunpack.c.l.b16 %v1378
      %v1414 = vunpack.c.l.b16 %v1379
      %v1415 = vunpack.c.l.b16 %v1380
      %v1416 = vpack.c.b16 %v1401, %v1400
      %v1417 = vpack.c.b16 %v1403, %v1402
      %v1418 = vpack.c.b16 %v1405, %v1404
      %v1419 = vpack.c.b16 %v1407, %v1406
      %v1420 = vpack.c.b16 %v1409, %v1408
      %v1421 = vpack.c.b16 %v1411, %v1410
      %v1422 = vpack.c.b16 %v1413, %v1412
      %v1423 = vpack.c.b16 %v1415, %v1414
      %1432 = vmatprep.subr.bf16.mxu0 0
      %1433 = vmatpush1.bf16.msra.mxu0 %v1416
      %1434 = vmatprep.subr.bf16.mxu0 0
      %1435 = vmatpush1.bf16.msra.mxu0 %v1417
      %1436 = vmatprep.subr.bf16.mxu0 0
      %1437 = vmatpush1.bf16.msra.mxu0 %v1418
      %1438 = vmatprep.subr.bf16.mxu0 0
      %1439 = vmatpush1.bf16.msra.mxu0 %v1419
      %1440 = vmatprep.subr.bf16.mxu0 0
      %1441 = vmatpush1.bf16.msra.mxu0 %v1420
      %1442 = vmatprep.subr.bf16.mxu0 0
      %1443 = vmatpush1.bf16.msra.mxu0 %v1421
      %1444 = vmatprep.subr.bf16.mxu0 0
      %1445 = vmatpush1.bf16.msra.mxu0 %v1422
      %1446 = vmatprep.subr.bf16.mxu0 0
      %1447 = vmatpush1.bf16.msra.mxu0 %v1423
      %1448 = vmatprep.subr.bf16.mxu0 0
      %1449 = vmatpush1.bf16.msra.mxu0 0
      %1450 = vmatprep.subr.bf16.mxu0 0
      %1451 = vmatpush1.bf16.msra.mxu0 0
      %1452 = vmatprep.subr.bf16.mxu0 0
      %1453 = vmatpush1.bf16.msra.mxu0 0
      %1454 = vmatprep.subr.bf16.mxu0 0
      %1455 = vmatpush1.bf16.msra.mxu0 0
      %1456 = vmatprep.subr.bf16.mxu0 0
      %1457 = vmatpush1.bf16.msra.mxu0 0
      %1458 = vmatprep.subr.bf16.mxu0 0
      %1459 = vmatpush1.bf16.msra.mxu0 0
      %1460 = vmatprep.subr.bf16.mxu0 0
      %1461 = vmatpush1.bf16.msra.mxu0 0
      %1462 = vmatprep.subr.bf16.mxu0 0
      %1463 = vmatpush1.bf16.msra.mxu0 0
      %1464 = vmatprep.mubr.bf16.mxu0 0
      %1465 = vmatmul.mubr.bf16.gmra.mrb[0].mxu0 %v1382
      %v1466 = vpop.f32.mrb[0].mxu0
      %v1467 = vadd.f32 0.0, %v1466
      %v1468 = vpop.f32.mrb[0].mxu0
      %v1469 = vpop.f32.mrb[0].mxu0
      %v1470 = vpop.f32.mrb[0].mxu0
      %1471 = vdwg.mxu0
      %v1472 = vadd.f32 %v1359, %v1467
      %v1473 = vld [vmem:[%s8] sm:$0x1]
      %v1475 = vlaneseq
      %v1476 = vshrl.u32 %v1475, 7
      %v1477 = vsub.s32 0, %v1476
      %v1478 = vrot.slane %v1473, %v1477
      %v1480 = vadd.f32 %v1472, %v1478
      %v1481 = vxor.u32 %v1480, 2147483648
      %v1482 = vmul.f32 %v1481, 1.442695
      %v1483 = vpow.pop %v1482
      %v1484 = vadd.f32 %v1483, 1.0
      %v1485 = vrcp.pop %v1484
      %v1486 = vmul.f32 1.0, %v1485
      %vm1487 = vcmask 519168
      %1488 = vst.msk [vmem:[%s330] sm:$0xf] %vm1487, %v1486
      %p1489 = scmp.lt.s32.totalorder %s20, 1
      %s1490 = scalar_select %p1489, %s20, 1
      %s1491 = smul.addr %s1490, 4
      %s1492 = scalar_lea.vmem %s9, %s1491
      // Predicated region
      $region57: #{cnn_class_forward.1} parent=55 // pred_check
        %p1493 = pneg %p232
      $region58: #{cnn_class_forward.1} parent=55 // pred_check_branch
        %1495 = sbr.rel (%p1493) target = $region60
      $region59: #{cnn_class_forward.1} parent=55 // pred_region
        _
      $region60: #{cnn_class_forward.1} parent=55 // pred_fallthru
        _
    $region56: #{cnn_class_forward.1} parent=5 // pred_fallthru
      _
    %p1496 = scmp.le.s32.totalorder 2, %s15
    // Predicated region
    $region61: #{cnn_class_forward.1} parent=5 // pred_check
      %p1497 = pneg %p1496
    $region62: #{cnn_class_forward.1} parent=5 // pred_check_branch
      %1499 = sbr.rel (%p1497) target = $region64
    $region63: #{cnn_class_forward.1} parent=5 // pred_region
      %s1500 = ssub.s32 %s15, 2
      // Predicated region
      $region65: #{cnn_class_forward.1} parent=63 // pred_check
        %p1501 = pneg %p238
      $region66: #{cnn_class_forward.1} parent=63 // pred_check_branch
        %1503 = sbr.rel (%p1501) target = $region68
      $region67: #{cnn_class_forward.1} parent=63 // pred_region
        %p1504 = scmp.lt.s32.totalorder %s21, 1
        %s1505 = scalar_select %p1504, %s21, 1
        %s1506 = smul.addr %s1505, 4
        %s1507 = scalar_lea.vmem %s9, %s1506
      $region68: #{cnn_class_forward.1} parent=63 // pred_fallthru
        _
    $region64: #{cnn_class_forward.1} parent=5 // pred_fallthru
      _
  $region6: #{cnn_class_forward.1} parent=0 // loop_footer
    %s19 = sadd.s32 1, %s15
  $region7: #{cnn_class_forward.1} parent=0 // loop_footer_branch
    %14 = sbr.rel target = $region3
  $region8: #{cnn_class_forward.1} parent=0 // loop_exit
    _

</llo_original>
